<compile_context>
chip_gen: v7x
topology: tpu7x:2x2x1
jax: 0.10.0
libtpu: 0.0.40
codegen_flags: <defaults>
</compile_context>

<pallas_src>
import jax
import jax.numpy as jnp
from jax.experimental import pallas as pl
from jax.experimental.pallas import tpu as pltpu

LANE = 128


def _round_up(x, m):
    return (x + m - 1) // m * m


def _batch_tile_target():
    """512 on v6e/v7x (underfilled 256-wide MXU), 256 on v5e."""
    try:
        kind = jax.devices()[0].device_kind.lower()
        if "v5 lite" in kind or "v5e" in kind or "v5litepod" in kind:
            return 256
    except Exception:
        pass
    return 512


def _autoencoder_kernel(x_ref,
                        w1, b1, w2, b2, w3, b3,
                        w4, b4, w5, b5, w6, b6,
                        o_ref):
    # x_ref: (tile_b, Dp) f32; weights: bf16 (in, out); biases: f32 (1, out).
    def layer(h_bf16, w_ref, b_ref, relu):
        y = jnp.dot(h_bf16, w_ref[...],
                    preferred_element_type=jnp.float32) + b_ref[...]
        if relu:
            # bf16 intermediates: next matmul consumes bf16 anyway; halves spill bytes.
            return jnp.maximum(y, 0.0).astype(jnp.bfloat16)
        return y

    h = x_ref[...].astype(jnp.bfloat16)
    # encoder
    h = layer(h, w1, b1, True)
    h = layer(h, w2, b2, True)
    h = layer(h, w3, b3, True)
    # decoder
    h = layer(h, w4, b4, True)
    h = layer(h, w5, b5, True)
    h = layer(h, w6, b6, False)          # f32 result
    o_ref[...] = h.astype(o_ref.dtype)


def autoencoder_forward(x, params, *, tile_b=None):
    """x: (B, D) float32.  params: list of (W_t (in,out), b_row (1,out)) for 6 layers."""
    B, D = x.shape
    Dp = _round_up(D, LANE)              # lane-dense input/output feature axis

    # --- batch tiling: pick an EVEN tile count first, then derive tile_b ---------
    if tile_b is None:
        target = _batch_tile_target()
        n_tiles = max(2, _round_up(pl.cdiv(B, target), 2))   # even -> v7x 2-TC balance
        tile_b = _round_up(pl.cdiv(B, n_tiles), 16)           # 16-row (bf16 sublane) align
    else:
        tile_b = _round_up(tile_b, 16)
        n_tiles = pl.cdiv(B, tile_b)
    Bp = n_tiles * tile_b

    # Pad batch/features; keep x in f32 (cast happens inside the kernel).
    xp = x
    if (Bp, Dp) != (B, D):
        xp = jnp.pad(x, ((0, Bp - B), (0, Dp - D)))

    # Weights -> bf16; pad first-layer input dim and last-layer output dim to Dp.
    n_layers = len(params)
    flat_params = []
    for idx, (w, b) in enumerate(params):
        din, dout = w.shape
        pad_in = Dp - din if idx == 0 else 0
        pad_out = Dp - dout if idx == n_layers - 1 else 0
        if pad_in or pad_out:
            w = jnp.pad(w, ((0, pad_in), (0, pad_out)))
            b = jnp.pad(b, ((0, 0), (0, pad_out)))
        flat_params += [w.astype(jnp.bfloat16), b.astype(jnp.float32)]

    # Specs: activations tiled over the batch; weights/biases resident whole in VMEM
    # (constant index across the grid -> single-buffered).
    x_spec = pl.BlockSpec((tile_b, Dp), lambda i: (i, 0))
    out_spec = pl.BlockSpec((tile_b, Dp), lambda i: (i, 0))
    vmem_spec = pl.BlockSpec(memory_space=pltpu.MemorySpace.VMEM)
    in_specs = [x_spec] + [vmem_spec] * len(flat_params)

    # Cost estimate (padded shapes, actual dtypes) so XLA schedules the call sensibly.
    pdims = [(flat_params[2 * i].shape[0], flat_params[2 * i].shape[1])
             for i in range(n_layers)]
    flops = 2 * Bp * sum(din * dout for din, dout in pdims)
    param_bytes = sum(int(p.size) * p.dtype.itemsize for p in flat_params)
    bytes_accessed = Bp * Dp * 4 + param_bytes + Bp * Dp * 4   # f32 in + params + f32 out
    cost = pl.CostEstimate(flops=int(flops), transcendentals=0,
                           bytes_accessed=int(bytes_accessed))

    # VMEM budget from actual need: resident params + double-buffered f32 in/out tiles
    # + bf16 intermediate headroom + fixed slack.  Stays far below v7x's 64 MiB.
    act_bytes = 2 * tile_b * Dp * (4 + 4)        # f32 in + f32 out, double-buffered
    interm_bytes = 6 * tile_b * 512 * 2          # bf16 intermediates headroom
    vmem_limit = param_bytes + act_bytes + interm_bytes + 8 * 1024 * 1024
    vmem_limit = min(vmem_limit, 56 * 1024 * 1024)
    # Guard whole-weight VMEM residency (breaks first on v7x for very large input_size).
    # TODO(synk): for huge input_size, tile the first/last weight over the grid or keep
    # it in pl.ANY + pltpu.emit_pipeline instead of asserting.
    assert param_bytes + act_bytes + interm_bytes < 48 * 1024 * 1024, (
        "weights too large to keep resident in VMEM; needs a pipelined-weight fallback")

    out_p = pl.pallas_call(
        _autoencoder_kernel,
        out_shape=jax.ShapeDtypeStruct((Bp, Dp), jnp.float32),
        grid_spec=pltpu.PrefetchScalarGridSpec(
            num_scalar_prefetch=0,
            grid=(n_tiles,),
            in_specs=in_specs,
            out_specs=out_spec,
        ),
        compiler_params=pltpu.CompilerParams(
            dimension_semantics=("parallel",),
            vmem_limit_bytes=int(vmem_limit),
        ),
        cost_estimate=cost,
    )(xp, *flat_params)

    return out_p[:B, :D]


def init_params(key, input_size):
    """Deterministic synthetic init mimicking nn.Linear shapes.
    Returns list of (W_transposed (in,out), bias (1,out)) for the 6 layers."""
    dims = [(input_size, 128), (128, 256), (256, 512),
            (512, 256), (256, 128), (128, input_size)]
    params = []
    for (din, dout) in dims:
        key, kw, kb = jax.random.split(key, 3)
        bound = 1.0 / (din ** 0.5)
        w = jax.random.uniform(kw, (din, dout), jnp.float32, -bound, bound)
        b = jax.random.uniform(kb, (1, dout), jnp.float32, -bound, bound)
        params.append((w, b))
    return params


def reference_forward(x, params):
    # Same numerics as the kernel: bf16 matmul operands + bf16 intermediates,
    # f32 accumulate, f32 bias/ReLU epilogue, f32 final layer.
    h = x.astype(jnp.bfloat16)
    out = None
    for idx, (w, b) in enumerate(params):
        y = jnp.dot(h, w.astype(jnp.bfloat16),
                    preferred_element_type=jnp.float32) + b
        if idx < len(params) - 1:
            h = jnp.maximum(y, 0.0).astype(jnp.bfloat16)
        else:
            out = y
    return out


if __name__ == "__main__":
    key = jax.random.PRNGKey(0)
    k_x, k_p = jax.random.split(key)

    B, D = 256, 64          # D=64 gets lane-padded to 128; batch splits into 2 tiles of 128
    x = jax.random.normal(k_x, (B, D), jnp.float32)
    params = init_params(k_p, D)

    out = jax.block_until_ready(autoencoder_forward(x, params))
    ref = reference_forward(x, params)

    assert out.shape == (B, D)
    max_err = float(jnp.max(jnp.abs(out - ref)))
    assert jnp.allclose(out, ref, atol=2e-2, rtol=2e-2), f"mismatch vs reference: {max_err}"

    print("KERNEL_OK")
</pallas_src>

<mosaic_0001>
module attributes {stable_mosaic.version = 11 : i64} {
  func.func @_autoencoder_kernel(%arg0: i32, %arg1: memref<128x128xf32, #tpu.memory_space<vmem>>, %arg2: memref<128x128xbf16, #tpu.memory_space<vmem>>, %arg3: memref<1x128xf32, #tpu.memory_space<vmem>>, %arg4: memref<128x256xbf16, #tpu.memory_space<vmem>>, %arg5: memref<1x256xf32, #tpu.memory_space<vmem>>, %arg6: memref<256x512xbf16, #tpu.memory_space<vmem>>, %arg7: memref<1x512xf32, #tpu.memory_space<vmem>>, %arg8: memref<512x256xbf16, #tpu.memory_space<vmem>>, %arg9: memref<1x256xf32, #tpu.memory_space<vmem>>, %arg10: memref<256x128xbf16, #tpu.memory_space<vmem>>, %arg11: memref<1x128xf32, #tpu.memory_space<vmem>>, %arg12: memref<128x128xbf16, #tpu.memory_space<vmem>>, %arg13: memref<1x128xf32, #tpu.memory_space<vmem>>, %arg14: memref<128x128xf32, #tpu.memory_space<vmem>>) attributes {dimension_semantics = [#tpu.dimension_semantics<parallel>], iteration_bounds = array<i64: 2>, scalar_prefetch = 0 : i64, scratch_operands = 0 : i64, tpu.core_type = #tpu.core_type<tc>, window_params = [{transform_indices = @transform_0, window_bounds = array<i64: 128, 128>}, {pipeline_mode = #tpu.pipeline_mode<synchronous>, transform_indices = @transform_1, window_bounds = array<i64: 128, 128>}, {pipeline_mode = #tpu.pipeline_mode<synchronous>, transform_indices = @transform_2, window_bounds = array<i64: 1, 128>}, {pipeline_mode = #tpu.pipeline_mode<synchronous>, transform_indices = @transform_3, window_bounds = array<i64: 128, 256>}, {pipeline_mode = #tpu.pipeline_mode<synchronous>, transform_indices = @transform_4, window_bounds = array<i64: 1, 256>}, {pipeline_mode = #tpu.pipeline_mode<synchronous>, transform_indices = @transform_5, window_bounds = array<i64: 256, 512>}, {pipeline_mode = #tpu.pipeline_mode<synchronous>, transform_indices = @transform_6, window_bounds = array<i64: 1, 512>}, {pipeline_mode = #tpu.pipeline_mode<synchronous>, transform_indices = @transform_7, window_bounds = array<i64: 512, 256>}, {pipeline_mode = #tpu.pipeline_mode<synchronous>, transform_indices = @transform_8, window_bounds = array<i64: 1, 256>}, {pipeline_mode = #tpu.pipeline_mode<synchronous>, transform_indices = @transform_9, window_bounds = array<i64: 256, 128>}, {pipeline_mode = #tpu.pipeline_mode<synchronous>, transform_indices = @transform_10, window_bounds = array<i64: 1, 128>}, {pipeline_mode = #tpu.pipeline_mode<synchronous>, transform_indices = @transform_11, window_bounds = array<i64: 128, 128>}, {pipeline_mode = #tpu.pipeline_mode<synchronous>, transform_indices = @transform_12, window_bounds = array<i64: 1, 128>}, {transform_indices = @transform_13, window_bounds = array<i64: 128, 128>}]} {
    %c0 = arith.constant 0 : index
    %c0_0 = arith.constant 0 : index
    %0 = vector.load %arg1[%c0, %c0_0] : memref<128x128xf32, #tpu.memory_space<vmem>>, vector<128x128xf32>
    %1 = arith.truncf %0 : vector<128x128xf32> to vector<128x128xbf16>
    %c0_1 = arith.constant 0 : index
    %c0_2 = arith.constant 0 : index
    %2 = vector.load %arg2[%c0_1, %c0_2] : memref<128x128xbf16, #tpu.memory_space<vmem>>, vector<128x128xbf16>
    %cst = arith.constant dense<0.000000e+00> : vector<128x128xf32>
    %3 = tpu.matmul %1, %2, %cst {dimension_numbers = #tpu.dot_dimension_numbers<[1], [0], [0], [1], [0, 0, 1, 1], [], []>} : vector<128x128xbf16>, vector<128x128xbf16>, vector<128x128xf32> -> vector<128x128xf32>
    %c0_3 = arith.constant 0 : index
    %c0_4 = arith.constant 0 : index
    %4 = vector.load %arg3[%c0_3, %c0_4] : memref<1x128xf32, #tpu.memory_space<vmem>>, vector<1x128xf32>
    %5 = vector.broadcast %4 : vector<1x128xf32> to vector<128x128xf32>
    %6 = arith.addf %3, %5 : vector<128x128xf32>
    %cst_5 = arith.constant 0.000000e+00 : f32
    %7 = vector.broadcast %cst_5 : f32 to vector<128x128xf32>
    %8 = arith.maximumf %6, %7 : vector<128x128xf32>
    %9 = arith.truncf %8 : vector<128x128xf32> to vector<128x128xbf16>
    %c0_6 = arith.constant 0 : index
    %c0_7 = arith.constant 0 : index
    %10 = vector.load %arg4[%c0_6, %c0_7] : memref<128x256xbf16, #tpu.memory_space<vmem>>, vector<128x256xbf16>
    %cst_8 = arith.constant dense<0.000000e+00> : vector<128x256xf32>
    %11 = tpu.matmul %9, %10, %cst_8 {dimension_numbers = #tpu.dot_dimension_numbers<[1], [0], [0], [1], [0, 0, 1, 1], [], []>} : vector<128x128xbf16>, vector<128x256xbf16>, vector<128x256xf32> -> vector<128x256xf32>
    %c0_9 = arith.constant 0 : index
    %c0_10 = arith.constant 0 : index
    %12 = vector.load %arg5[%c0_9, %c0_10] : memref<1x256xf32, #tpu.memory_space<vmem>>, vector<1x256xf32>
    %13 = vector.broadcast %12 : vector<1x256xf32> to vector<128x256xf32>
    %14 = arith.addf %11, %13 : vector<128x256xf32>
    %cst_11 = arith.constant 0.000000e+00 : f32
    %15 = vector.broadcast %cst_11 : f32 to vector<128x256xf32>
    %16 = arith.maximumf %14, %15 : vector<128x256xf32>
    %17 = arith.truncf %16 : vector<128x256xf32> to vector<128x256xbf16>
    %c0_12 = arith.constant 0 : index
    %c0_13 = arith.constant 0 : index
    %18 = vector.load %arg6[%c0_12, %c0_13] : memref<256x512xbf16, #tpu.memory_space<vmem>>, vector<256x512xbf16>
    %cst_14 = arith.constant dense<0.000000e+00> : vector<128x512xf32>
    %19 = tpu.matmul %17, %18, %cst_14 {dimension_numbers = #tpu.dot_dimension_numbers<[1], [0], [0], [1], [0, 0, 1, 1], [], []>} : vector<128x256xbf16>, vector<256x512xbf16>, vector<128x512xf32> -> vector<128x512xf32>
    %c0_15 = arith.constant 0 : index
    %c0_16 = arith.constant 0 : index
    %20 = vector.load %arg7[%c0_15, %c0_16] : memref<1x512xf32, #tpu.memory_space<vmem>>, vector<1x512xf32>
    %21 = vector.broadcast %20 : vector<1x512xf32> to vector<128x512xf32>
    %22 = arith.addf %19, %21 : vector<128x512xf32>
    %cst_17 = arith.constant 0.000000e+00 : f32
    %23 = vector.broadcast %cst_17 : f32 to vector<128x512xf32>
    %24 = arith.maximumf %22, %23 : vector<128x512xf32>
    %25 = arith.truncf %24 : vector<128x512xf32> to vector<128x512xbf16>
    %c0_18 = arith.constant 0 : index
    %c0_19 = arith.constant 0 : index
    %26 = vector.load %arg8[%c0_18, %c0_19] : memref<512x256xbf16, #tpu.memory_space<vmem>>, vector<512x256xbf16>
    %cst_20 = arith.constant dense<0.000000e+00> : vector<128x256xf32>
    %27 = tpu.matmul %25, %26, %cst_20 {dimension_numbers = #tpu.dot_dimension_numbers<[1], [0], [0], [1], [0, 0, 1, 1], [], []>} : vector<128x512xbf16>, vector<512x256xbf16>, vector<128x256xf32> -> vector<128x256xf32>
    %c0_21 = arith.constant 0 : index
    %c0_22 = arith.constant 0 : index
    %28 = vector.load %arg9[%c0_21, %c0_22] : memref<1x256xf32, #tpu.memory_space<vmem>>, vector<1x256xf32>
    %29 = vector.broadcast %28 : vector<1x256xf32> to vector<128x256xf32>
    %30 = arith.addf %27, %29 : vector<128x256xf32>
    %cst_23 = arith.constant 0.000000e+00 : f32
    %31 = vector.broadcast %cst_23 : f32 to vector<128x256xf32>
    %32 = arith.maximumf %30, %31 : vector<128x256xf32>
    %33 = arith.truncf %32 : vector<128x256xf32> to vector<128x256xbf16>
    %c0_24 = arith.constant 0 : index
    %c0_25 = arith.constant 0 : index
    %34 = vector.load %arg10[%c0_24, %c0_25] : memref<256x128xbf16, #tpu.memory_space<vmem>>, vector<256x128xbf16>
    %cst_26 = arith.constant dense<0.000000e+00> : vector<128x128xf32>
    %35 = tpu.matmul %33, %34, %cst_26 {dimension_numbers = #tpu.dot_dimension_numbers<[1], [0], [0], [1], [0, 0, 1, 1], [], []>} : vector<128x256xbf16>, vector<256x128xbf16>, vector<128x128xf32> -> vector<128x128xf32>
    %c0_27 = arith.constant 0 : index
    %c0_28 = arith.constant 0 : index
    %36 = vector.load %arg11[%c0_27, %c0_28] : memref<1x128xf32, #tpu.memory_space<vmem>>, vector<1x128xf32>
    %37 = vector.broadcast %36 : vector<1x128xf32> to vector<128x128xf32>
    %38 = arith.addf %35, %37 : vector<128x128xf32>
    %cst_29 = arith.constant 0.000000e+00 : f32
    %39 = vector.broadcast %cst_29 : f32 to vector<128x128xf32>
    %40 = arith.maximumf %38, %39 : vector<128x128xf32>
    %41 = arith.truncf %40 : vector<128x128xf32> to vector<128x128xbf16>
    %c0_30 = arith.constant 0 : index
    %c0_31 = arith.constant 0 : index
    %42 = vector.load %arg12[%c0_30, %c0_31] : memref<128x128xbf16, #tpu.memory_space<vmem>>, vector<128x128xbf16>
    %cst_32 = arith.constant dense<0.000000e+00> : vector<128x128xf32>
    %43 = tpu.matmul %41, %42, %cst_32 {dimension_numbers = #tpu.dot_dimension_numbers<[1], [0], [0], [1], [0, 0, 1, 1], [], []>} : vector<128x128xbf16>, vector<128x128xbf16>, vector<128x128xf32> -> vector<128x128xf32>
    %c0_33 = arith.constant 0 : index
    %c0_34 = arith.constant 0 : index
    %44 = vector.load %arg13[%c0_33, %c0_34] : memref<1x128xf32, #tpu.memory_space<vmem>>, vector<1x128xf32>
    %45 = vector.broadcast %44 : vector<1x128xf32> to vector<128x128xf32>
    %46 = arith.addf %43, %45 : vector<128x128xf32>
    %c0_35 = arith.constant 0 : index
    %c0_36 = arith.constant 0 : index
    %47 = vector.load %arg14[%c0_35, %c0_36] : memref<128x128xf32, #tpu.memory_space<vmem>>, vector<128x128xf32>
    tpu.vector_store %arg14[%c0_35, %c0_36], %46 {strides = array<i32>} : memref<128x128xf32, #tpu.memory_space<vmem>>, vector<128x128xf32>,
    return
  }
  func.func @transform_0(%arg0: i32) -> (i32, i32) {
    %c0_i32 = arith.constant 0 : i32
    %c0_i32_0 = arith.constant 0 : i32
    return %arg0, %c0_i32 : i32, i32
  }
  func.func @transform_1(%arg0: i32) -> (i32, i32) {
    %c0_i32 = arith.constant 0 : i32
    %c0_i32_0 = arith.constant 0 : i32
    %c0_i32_1 = arith.constant 0 : i32
    return %c0_i32, %c0_i32_0 : i32, i32
  }
  func.func @transform_2(%arg0: i32) -> (i32, i32) {
    %c0_i32 = arith.constant 0 : i32
    %c0_i32_0 = arith.constant 0 : i32
    %c0_i32_1 = arith.constant 0 : i32
    return %c0_i32, %c0_i32_0 : i32, i32
  }
  func.func @transform_3(%arg0: i32) -> (i32, i32) {
    %c0_i32 = arith.constant 0 : i32
    %c0_i32_0 = arith.constant 0 : i32
    %c0_i32_1 = arith.constant 0 : i32
    return %c0_i32, %c0_i32_0 : i32, i32
  }
  func.func @transform_4(%arg0: i32) -> (i32, i32) {
    %c0_i32 = arith.constant 0 : i32
    %c0_i32_0 = arith.constant 0 : i32
    %c0_i32_1 = arith.constant 0 : i32
    return %c0_i32, %c0_i32_0 : i32, i32
  }
  func.func @transform_5(%arg0: i32) -> (i32, i32) {
    %c0_i32 = arith.constant 0 : i32
    %c0_i32_0 = arith.constant 0 : i32
    %c0_i32_1 = arith.constant 0 : i32
    return %c0_i32, %c0_i32_0 : i32, i32
  }
  func.func @transform_6(%arg0: i32) -> (i32, i32) {
    %c0_i32 = arith.constant 0 : i32
    %c0_i32_0 = arith.constant 0 : i32
    %c0_i32_1 = arith.constant 0 : i32
    return %c0_i32, %c0_i32_0 : i32, i32
  }
  func.func @transform_7(%arg0: i32) -> (i32, i32) {
    %c0_i32 = arith.constant 0 : i32
    %c0_i32_0 = arith.constant 0 : i32
    %c0_i32_1 = arith.constant 0 : i32
    return %c0_i32, %c0_i32_0 : i32, i32
  }
  func.func @transform_8(%arg0: i32) -> (i32, i32) {
    %c0_i32 = arith.constant 0 : i32
    %c0_i32_0 = arith.constant 0 : i32
    %c0_i32_1 = arith.constant 0 : i32
    return %c0_i32, %c0_i32_0 : i32, i32
  }
  func.func @transform_9(%arg0: i32) -> (i32, i32) {
    %c0_i32 = arith.constant 0 : i32
    %c0_i32_0 = arith.constant 0 : i32
    %c0_i32_1 = arith.constant 0 : i32
    return %c0_i32, %c0_i32_0 : i32, i32
  }
  func.func @transform_10(%arg0: i32) -> (i32, i32) {
    %c0_i32 = arith.constant 0 : i32
    %c0_i32_0 = arith.constant 0 : i32
    %c0_i32_1 = arith.constant 0 : i32
    return %c0_i32, %c0_i32_0 : i32, i32
  }
  func.func @transform_11(%arg0: i32) -> (i32, i32) {
    %c0_i32 = arith.constant 0 : i32
    %c0_i32_0 = arith.constant 0 : i32
    %c0_i32_1 = arith.constant 0 : i32
    return %c0_i32, %c0_i32_0 : i32, i32
  }
  func.func @transform_12(%arg0: i32) -> (i32, i32) {
    %c0_i32 = arith.constant 0 : i32
    %c0_i32_0 = arith.constant 0 : i32
    %c0_i32_1 = arith.constant 0 : i32
    return %c0_i32, %c0_i32_0 : i32, i32
  }
  func.func @transform_13(%arg0: i32) -> (i32, i32) {
    %c0_i32 = arith.constant 0 : i32
    %c0_i32_0 = arith.constant 0 : i32
    return %arg0, %c0_i32 : i32, i32
  }
}

</mosaic_0001>

<llo_original>
// kernel: tpu_custom_call.1
$region0: #{tpu_custom_call.1}
  #allocation0 [shape = 'u32[]', space=smem, size = 0x4, offset = 0x4, fixed_abs, tag = 'smem constant byte address 0x4 - core index']
  #allocation1 [shape = 'u32[144,128]{1,0:T(1,128)}', space=vmem, size = 0x12000, scoped, tag = 'internal scratch']
  %s0 = inlined_call_operand.hbm [shape: f32[256,128], index: 0, kind: input, shape index: {}]
  %s1 = inlined_call_operand.hbm [shape: bf16[128,128], index: 1, kind: input, shape index: {}]
  %s2 = inlined_call_operand.vmem [shape: f32[1,128], index: 2, kind: input, shape index: {}]
  %s3 = inlined_call_operand.hbm [shape: bf16[128,256], index: 3, kind: input, shape index: {}]
  %s4 = inlined_call_operand.vmem [shape: f32[1,256], index: 4, kind: input, shape index: {}]
  %s5 = inlined_call_operand.hbm [shape: bf16[256,512], index: 5, kind: input, shape index: {}]
  %s6 = inlined_call_operand.vmem [shape: f32[1,512], index: 6, kind: input, shape index: {}]
  %s7 = inlined_call_operand.hbm [shape: bf16[512,256], index: 7, kind: input, shape index: {}]
  %s8 = inlined_call_operand.vmem [shape: f32[1,256], index: 8, kind: input, shape index: {}]
  %s9 = inlined_call_operand.hbm [shape: bf16[256,128], index: 9, kind: input, shape index: {}]
  %s10 = inlined_call_operand.vmem [shape: f32[1,128], index: 10, kind: input, shape index: {}]
  %s11 = inlined_call_operand.hbm [shape: bf16[128,128], index: 11, kind: input, shape index: {}]
  %s12 = inlined_call_operand.vmem [shape: f32[1,128], index: 12, kind: input, shape index: {}]
  %s13 = inlined_call_operand.hbm [shape: f32[256,128], index: 13, kind: output, shape index: {}]
  %s14 = sld [smem:[#allocation0]]
  $region113: #{tpu_custom_call.1} parent=0
    _
  %s16 = ssub.s32 1, %s14
  %s17 = scalar_select 0, %s16, %s14
  $region1: #{tpu_custom_call.1} parent=0
    #allocation2 [shape = 'u8[131072]{0}', space=vmem, size = 0x20000, scoped, tag = 'input window, operand 0']
    #allocation3 [shape = 's32[2]{0}', space=sflag, size = 0x8, scoped, tag = 'scoped memory for tpu_custom_call.1']
    #allocation4 [shape = 's32[2]{0}', space=sflag, size = 0x8, scoped, tag = 'scoped memory for tpu_custom_call.1']
    #allocation5 [shape = 'u8[32768]{0}', space=vmem, size = 0x8000, scoped, tag = 'input window, operand 1, single buffered']
    #allocation6 [shape = 's32[1]{0}', space=sflag, size = 0x4, scoped, tag = 'scoped memory for tpu_custom_call.1']
    #allocation7 [shape = 'u8[65536]{0}', space=vmem, size = 0x10000, scoped, tag = 'input window, operand 3, single buffered']
    #allocation8 [shape = 'u8[262144]{0}', space=vmem, size = 0x40000, scoped, tag = 'input window, operand 5, single buffered']
    #allocation9 [shape = 's32[1]{0}', space=sflag, size = 0x4, scoped, tag = 'scoped memory for tpu_custom_call.1']
    #allocation10 [shape = 'u8[262144]{0}', space=vmem, size = 0x40000, scoped, tag = 'input window, operand 7, single buffered']
    #allocation11 [shape = 'u8[65536]{0}', space=vmem, size = 0x10000, scoped, tag = 'input window, operand 9, single buffered']
    #allocation12 [shape = 's32[1]{0}', space=sflag, size = 0x4, scoped, tag = 'scoped memory for tpu_custom_call.1']
    #allocation13 [shape = 'u8[32768]{0}', space=vmem, size = 0x8000, scoped, tag = 'input window, operand 11, single buffered']
    #allocation14 [shape = 'u8[131072]{0}', space=vmem, size = 0x20000, scoped, tag = 'output window, operand 0']
    %18 = vsyncpa [#allocation3], 0
    %s19 = scalar_lea.sflag [#allocation3], 1
    %20 = vsyncpa %s19, 0
    %21 = vsyncpa [#allocation6], 0
    %22 = vsyncpa [#allocation9], 0
    %23 = vsyncpa [#allocation12], 0
    %24 = vsyncpa [#allocation4], 0
    %s25 = scalar_lea.sflag [#allocation4], 1
    %26 = vsyncpa %s25, 0
    loop: start=0, step=1, limit=4
    $region2: #{tpu_custom_call.1} parent=1 // loop_pre_header
      _
    $region3: #{tpu_custom_call.1} parent=1 // loop_header
      %s28 = sphi 0, %s32
      %p29 = scmp.ge.s32.totalorder %s28, 4
      %s38 = sphi 0, %s40
      %s41 = sphi 0, %s38
      %s42 = sphi 0, %s41
      %s58 = sphi 0, %s42
      %s62 = sphi 0, %s62
      %s64 = sphi 0, %s62
      %s65 = sphi 0, %s64
      %s79 = sphi 0, %s65
      %s83 = sphi 0, %s83
      %s85 = sphi 0, %s83
      %s86 = sphi 0, %s85
      %s100 = sphi 0, %s86
      %s104 = sphi 0, %s104
      %s106 = sphi 0, %s104
      %s107 = sphi 0, %s106
      %s121 = sphi 0, %s107
      %s125 = sphi 0, %s125
      %s127 = sphi 0, %s125
      %s128 = sphi 0, %s127
      %s142 = sphi 0, %s128
      %s146 = sphi 0, %s146
      %s148 = sphi 0, %s146
      %s149 = sphi 0, %s148
      %s163 = sphi 0, %s149
      %s167 = sphi 0, %s167
      %s169 = sphi 0, %s167
      %s170 = sphi 0, %s169
      %s184 = sphi 0, %s170
      %s188 = sphi 0, %s188
      %s190 = sphi 0, %s188
      %s191 = sphi 0, %s190
      %s205 = sphi 0, %s191
      %s209 = sphi 0, %s209
      %s211 = sphi 0, %s209
      %s212 = sphi 0, %s211
      %s226 = sphi 0, %s212
      %s230 = sphi 0, %s230
      %s232 = sphi 0, %s230
      %s233 = sphi 0, %s232
      %s247 = sphi 0, %s233
      %s251 = sphi 0, %s251
      %s253 = sphi 0, %s251
      %s254 = sphi 0, %s253
      %s268 = sphi 0, %s254
      %s272 = sphi 0, %s272
      %s274 = sphi 0, %s272
      %s275 = sphi 0, %s274
      %s289 = sphi 0, %s275
      %s293 = sphi 0, %s293
      %s295 = sphi 0, %s293
      %s296 = sphi 0, %s295
      %s310 = sphi 0, %s296
      %s316 = sphi 0, %s318
      %s319 = sphi 0, %s316
      %s320 = sphi 0, %s319
      %s336 = sphi 0, %s320
    $region4: #{tpu_custom_call.1} parent=1 // loop_header_branch
      %31 = sbr.rel (%p29) target = $region8
    $region5: #{tpu_custom_call.1} parent=1 // loop_body
      %s33 = ssub.s32 %s28, 1
      %s34 = ssub.s32 %s28, 2
      %s35 = sadd.s32 %s28, 1
      %s36 = ssub.s32 %s28, %s35
      %p37 = scmp.eq.s32.totalorder %s36, 0
      %s39 = sadd.s32 %s38, 1
      %s40 = scalar_select %p37, %s38, %s39
      %p43 = pneg %p37
      %p44 = scmp.eq.s32.totalorder %s28, 1
      %p45 = por %p43, %p44
      %p46 = scmp.ne.s32.totalorder %s38, %s41
      %p47 = scmp.eq.s32.totalorder %s28, 0
      %p48 = por %p46, %p47
      %p49 = scmp.ne.s32.totalorder %s38, %s41
      %p50 = scmp.eq.s32.totalorder %s33, 1
      %p51 = por %p49, %p50
      %p52 = scmp.ne.s32.totalorder %s41, %s42
      %p53 = scmp.eq.s32.totalorder %s33, 0
      %p54 = por %p52, %p53
      %p55 = scmp.ne.s32.totalorder %s41, %s42
      %p56 = scmp.eq.s32.totalorder %s34, 1
      %p57 = por %p55, %p56
      %p59 = scmp.ne.s32.totalorder %s42, %s58
      %p60 = scmp.eq.s32.totalorder %s34, 0
      %p61 = por %p59, %p60
      %s63 = sadd.s32 %s62, 1
      %p66 = scmp.eq.s32.totalorder %s28, 1
      %p67 = scmp.ne.s32.totalorder %s62, %s64
      %p68 = scmp.eq.s32.totalorder %s28, 0
      %p69 = por %p67, %p68
      %p70 = scmp.ne.s32.totalorder %s62, %s64
      %p71 = scmp.eq.s32.totalorder %s33, 1
      %p72 = por %p70, %p71
      %p73 = scmp.ne.s32.totalorder %s64, %s65
      %p74 = scmp.eq.s32.totalorder %s33, 0
      %p75 = por %p73, %p74
      %p76 = scmp.ne.s32.totalorder %s64, %s65
      %p77 = scmp.eq.s32.totalorder %s34, 1
      %p78 = por %p76, %p77
      %p80 = scmp.ne.s32.totalorder %s65, %s79
      %p81 = scmp.eq.s32.totalorder %s34, 0
      %p82 = por %p80, %p81
      %s84 = sadd.s32 %s83, 1
      %p87 = scmp.eq.s32.totalorder %s28, 1
      %p88 = scmp.ne.s32.totalorder %s83, %s85
      %p89 = scmp.eq.s32.totalorder %s28, 0
      %p90 = por %p88, %p89
      %p91 = scmp.ne.s32.totalorder %s83, %s85
      %p92 = scmp.eq.s32.totalorder %s33, 1
      %p93 = por %p91, %p92
      %p94 = scmp.ne.s32.totalorder %s85, %s86
      %p95 = scmp.eq.s32.totalorder %s33, 0
      %p96 = por %p94, %p95
      %p97 = scmp.ne.s32.totalorder %s85, %s86
      %p98 = scmp.eq.s32.totalorder %s34, 1
      %p99 = por %p97, %p98
      %p101 = scmp.ne.s32.totalorder %s86, %s100
      %p102 = scmp.eq.s32.totalorder %s34, 0
      %p103 = por %p101, %p102
      %s105 = sadd.s32 %s104, 1
      %p108 = scmp.eq.s32.totalorder %s28, 1
      %p109 = scmp.ne.s32.totalorder %s104, %s106
      %p110 = scmp.eq.s32.totalorder %s28, 0
      %p111 = por %p109, %p110
      %p112 = scmp.ne.s32.totalorder %s104, %s106
      %p113 = scmp.eq.s32.totalorder %s33, 1
      %p114 = por %p112, %p113
      %p115 = scmp.ne.s32.totalorder %s106, %s107
      %p116 = scmp.eq.s32.totalorder %s33, 0
      %p117 = por %p115, %p116
      %p118 = scmp.ne.s32.totalorder %s106, %s107
      %p119 = scmp.eq.s32.totalorder %s34, 1
      %p120 = por %p118, %p119
      %p122 = scmp.ne.s32.totalorder %s107, %s121
      %p123 = scmp.eq.s32.totalorder %s34, 0
      %p124 = por %p122, %p123
      %s126 = sadd.s32 %s125, 1
      %p129 = scmp.eq.s32.totalorder %s28, 1
      %p130 = scmp.ne.s32.totalorder %s125, %s127
      %p131 = scmp.eq.s32.totalorder %s28, 0
      %p132 = por %p130, %p131
      %p133 = scmp.ne.s32.totalorder %s125, %s127
      %p134 = scmp.eq.s32.totalorder %s33, 1
      %p135 = por %p133, %p134
      %p136 = scmp.ne.s32.totalorder %s127, %s128
      %p137 = scmp.eq.s32.totalorder %s33, 0
      %p138 = por %p136, %p137
      %p139 = scmp.ne.s32.totalorder %s127, %s128
      %p140 = scmp.eq.s32.totalorder %s34, 1
      %p141 = por %p139, %p140
      %p143 = scmp.ne.s32.totalorder %s128, %s142
      %p144 = scmp.eq.s32.totalorder %s34, 0
      %p145 = por %p143, %p144
      %s147 = sadd.s32 %s146, 1
      %p150 = scmp.eq.s32.totalorder %s28, 1
      %p151 = scmp.ne.s32.totalorder %s146, %s148
      %p152 = scmp.eq.s32.totalorder %s28, 0
      %p153 = por %p151, %p152
      %p154 = scmp.ne.s32.totalorder %s146, %s148
      %p155 = scmp.eq.s32.totalorder %s33, 1
      %p156 = por %p154, %p155
      %p157 = scmp.ne.s32.totalorder %s148, %s149
      %p158 = scmp.eq.s32.totalorder %s33, 0
      %p159 = por %p157, %p158
      %p160 = scmp.ne.s32.totalorder %s148, %s149
      %p161 = scmp.eq.s32.totalorder %s34, 1
      %p162 = por %p160, %p161
      %p164 = scmp.ne.s32.totalorder %s149, %s163
      %p165 = scmp.eq.s32.totalorder %s34, 0
      %p166 = por %p164, %p165
      %s168 = sadd.s32 %s167, 1
      %p171 = scmp.eq.s32.totalorder %s28, 1
      %p172 = scmp.ne.s32.totalorder %s167, %s169
      %p173 = scmp.eq.s32.totalorder %s28, 0
      %p174 = por %p172, %p173
      %p175 = scmp.ne.s32.totalorder %s167, %s169
      %p176 = scmp.eq.s32.totalorder %s33, 1
      %p177 = por %p175, %p176
      %p178 = scmp.ne.s32.totalorder %s169, %s170
      %p179 = scmp.eq.s32.totalorder %s33, 0
      %p180 = por %p178, %p179
      %p181 = scmp.ne.s32.totalorder %s169, %s170
      %p182 = scmp.eq.s32.totalorder %s34, 1
      %p183 = por %p181, %p182
      %p185 = scmp.ne.s32.totalorder %s170, %s184
      %p186 = scmp.eq.s32.totalorder %s34, 0
      %p187 = por %p185, %p186
      %s189 = sadd.s32 %s188, 1
      %p192 = scmp.eq.s32.totalorder %s28, 1
      %p193 = scmp.ne.s32.totalorder %s188, %s190
      %p194 = scmp.eq.s32.totalorder %s28, 0
      %p195 = por %p193, %p194
      %p196 = scmp.ne.s32.totalorder %s188, %s190
      %p197 = scmp.eq.s32.totalorder %s33, 1
      %p198 = por %p196, %p197
      %p199 = scmp.ne.s32.totalorder %s190, %s191
      %p200 = scmp.eq.s32.totalorder %s33, 0
      %p201 = por %p199, %p200
      %p202 = scmp.ne.s32.totalorder %s190, %s191
      %p203 = scmp.eq.s32.totalorder %s34, 1
      %p204 = por %p202, %p203
      %p206 = scmp.ne.s32.totalorder %s191, %s205
      %p207 = scmp.eq.s32.totalorder %s34, 0
      %p208 = por %p206, %p207
      %s210 = sadd.s32 %s209, 1
      %p213 = scmp.eq.s32.totalorder %s28, 1
      %p214 = scmp.ne.s32.totalorder %s209, %s211
      %p215 = scmp.eq.s32.totalorder %s28, 0
      %p216 = por %p214, %p215
      %p217 = scmp.ne.s32.totalorder %s209, %s211
      %p218 = scmp.eq.s32.totalorder %s33, 1
      %p219 = por %p217, %p218
      %p220 = scmp.ne.s32.totalorder %s211, %s212
      %p221 = scmp.eq.s32.totalorder %s33, 0
      %p222 = por %p220, %p221
      %p223 = scmp.ne.s32.totalorder %s211, %s212
      %p224 = scmp.eq.s32.totalorder %s34, 1
      %p225 = por %p223, %p224
      %p227 = scmp.ne.s32.totalorder %s212, %s226
      %p228 = scmp.eq.s32.totalorder %s34, 0
      %p229 = por %p227, %p228
      %s231 = sadd.s32 %s230, 1
      %p234 = scmp.eq.s32.totalorder %s28, 1
      %p235 = scmp.ne.s32.totalorder %s230, %s232
      %p236 = scmp.eq.s32.totalorder %s28, 0
      %p237 = por %p235, %p236
      %p238 = scmp.ne.s32.totalorder %s230, %s232
      %p239 = scmp.eq.s32.totalorder %s33, 1
      %p240 = por %p238, %p239
      %p241 = scmp.ne.s32.totalorder %s232, %s233
      %p242 = scmp.eq.s32.totalorder %s33, 0
      %p243 = por %p241, %p242
      %p244 = scmp.ne.s32.totalorder %s232, %s233
      %p245 = scmp.eq.s32.totalorder %s34, 1
      %p246 = por %p244, %p245
      %p248 = scmp.ne.s32.totalorder %s233, %s247
      %p249 = scmp.eq.s32.totalorder %s34, 0
      %p250 = por %p248, %p249
      %s252 = sadd.s32 %s251, 1
      %p255 = scmp.eq.s32.totalorder %s28, 1
      %p256 = scmp.ne.s32.totalorder %s251, %s253
      %p257 = scmp.eq.s32.totalorder %s28, 0
      %p258 = por %p256, %p257
      %p259 = scmp.ne.s32.totalorder %s251, %s253
      %p260 = scmp.eq.s32.totalorder %s33, 1
      %p261 = por %p259, %p260
      %p262 = scmp.ne.s32.totalorder %s253, %s254
      %p263 = scmp.eq.s32.totalorder %s33, 0
      %p264 = por %p262, %p263
      %p265 = scmp.ne.s32.totalorder %s253, %s254
      %p266 = scmp.eq.s32.totalorder %s34, 1
      %p267 = por %p265, %p266
      %p269 = scmp.ne.s32.totalorder %s254, %s268
      %p270 = scmp.eq.s32.totalorder %s34, 0
      %p271 = por %p269, %p270
      %s273 = sadd.s32 %s272, 1
      %p276 = scmp.eq.s32.totalorder %s28, 1
      %p277 = scmp.ne.s32.totalorder %s272, %s274
      %p278 = scmp.eq.s32.totalorder %s28, 0
      %p279 = por %p277, %p278
      %p280 = scmp.ne.s32.totalorder %s272, %s274
      %p281 = scmp.eq.s32.totalorder %s33, 1
      %p282 = por %p280, %p281
      %p283 = scmp.ne.s32.totalorder %s274, %s275
      %p284 = scmp.eq.s32.totalorder %s33, 0
      %p285 = por %p283, %p284
      %p286 = scmp.ne.s32.totalorder %s274, %s275
      %p287 = scmp.eq.s32.totalorder %s34, 1
      %p288 = por %p286, %p287
      %p290 = scmp.ne.s32.totalorder %s275, %s289
      %p291 = scmp.eq.s32.totalorder %s34, 0
      %p292 = por %p290, %p291
      %s294 = sadd.s32 %s293, 1
      %p297 = scmp.eq.s32.totalorder %s28, 1
      %p298 = scmp.ne.s32.totalorder %s293, %s295
      %p299 = scmp.eq.s32.totalorder %s28, 0
      %p300 = por %p298, %p299
      %p301 = scmp.ne.s32.totalorder %s293, %s295
      %p302 = scmp.eq.s32.totalorder %s33, 1
      %p303 = por %p301, %p302
      %p304 = scmp.ne.s32.totalorder %s295, %s296
      %p305 = scmp.eq.s32.totalorder %s33, 0
      %p306 = por %p304, %p305
      %p307 = scmp.ne.s32.totalorder %s295, %s296
      %p308 = scmp.eq.s32.totalorder %s34, 1
      %p309 = por %p307, %p308
      %p311 = scmp.ne.s32.totalorder %s296, %s310
      %p312 = scmp.eq.s32.totalorder %s34, 0
      %p313 = por %p311, %p312
      %s314 = ssub.s32 %s28, %s35
      %p315 = scmp.eq.s32.totalorder %s314, 0
      %s317 = sadd.s32 %s316, 1
      %s318 = scalar_select %p315, %s316, %s317
      %p321 = pneg %p315
      %p322 = scmp.eq.s32.totalorder %s28, 1
      %p323 = por %p321, %p322
      %p324 = scmp.ne.s32.totalorder %s316, %s319
      %p325 = scmp.eq.s32.totalorder %s28, 0
      %p326 = por %p324, %p325
      %p327 = scmp.ne.s32.totalorder %s316, %s319
      %p328 = scmp.eq.s32.totalorder %s33, 1
      %p329 = por %p327, %p328
      %p330 = scmp.ne.s32.totalorder %s319, %s320
      %p331 = scmp.eq.s32.totalorder %s33, 0
      %p332 = por %p330, %p331
      %p333 = scmp.ne.s32.totalorder %s319, %s320
      %p334 = scmp.eq.s32.totalorder %s34, 1
      %p335 = por %p333, %p334
      %p337 = scmp.ne.s32.totalorder %s320, %s336
      %p338 = scmp.eq.s32.totalorder %s34, 0
      %p339 = por %p337, %p338
      %p340 = scmp.le.s32.totalorder 1, %s28
      %p341 = scmp.lt.s32.totalorder %s28, 3
      %p342 = pnand %p340, %p341
      %p343 = pneg %p342
      // Predicated region
      $region9: #{tpu_custom_call.1} parent=5 // pred_check
        _
      $region10: #{tpu_custom_call.1} parent=5 // pred_check_branch
        %345 = sbr.rel (%p342) target = $region12
      $region11: #{tpu_custom_call.1} parent=5 // pred_region
        %s346 = ssub.s32 %s28, 1
        // Predicated region
        $region13: #{tpu_custom_call.1} parent=11 // pred_check
          %p347 = pneg %p75
        $region14: #{tpu_custom_call.1} parent=11 // pred_check_branch
          %349 = sbr.rel (%p347) target = $region16
        $region15: #{tpu_custom_call.1} parent=11 // pred_region
          %s351 = ssub.s32 1024, 1024
          %352 = vsyncadd [#allocation6], %s351
          %s353 = sshll.u32 [#allocation5], 4
          %s354 = int_to_ptr.vmem [resolvable:$true] %s353
          %359 = dma.hbm_to_vmem [thread:$0]  %s1, 1024, %s354, [#allocation6], 64, 64, 4
        $region16: #{tpu_custom_call.1} parent=11 // pred_fallthru
          _
        // Predicated region
        $region17: #{tpu_custom_call.1} parent=11 // pred_check
          %p360 = pneg %p96
        $region18: #{tpu_custom_call.1} parent=11 // pred_check_branch
          %362 = sbr.rel (%p360) target = $region20
        $region19: #{tpu_custom_call.1} parent=11 // pred_region
          _
        $region20: #{tpu_custom_call.1} parent=11 // pred_fallthru
          _
        // Predicated region
        $region21: #{tpu_custom_call.1} parent=11 // pred_check
          %p363 = pneg %p117
        $region22: #{tpu_custom_call.1} parent=11 // pred_check_branch
          %365 = sbr.rel (%p363) target = $region24
        $region23: #{tpu_custom_call.1} parent=11 // pred_region
          %s367 = ssub.s32 2048, 2048
          %368 = vsyncadd [#allocation6], %s367
          %s369 = sshll.u32 [#allocation7], 4
          %s370 = int_to_ptr.vmem [resolvable:$true] %s369
          %375 = dma.hbm_to_vmem [thread:$0]  %s3, 2048, %s370, [#allocation6], 128, 128, 8
        $region24: #{tpu_custom_call.1} parent=11 // pred_fallthru
          _
        // Predicated region
        $region25: #{tpu_custom_call.1} parent=11 // pred_check
          %p376 = pneg %p138
        $region26: #{tpu_custom_call.1} parent=11 // pred_check_branch
          %378 = sbr.rel (%p376) target = $region28
        $region27: #{tpu_custom_call.1} parent=11 // pred_region
          _
        $region28: #{tpu_custom_call.1} parent=11 // pred_fallthru
          _
        // Predicated region
        $region29: #{tpu_custom_call.1} parent=11 // pred_check
          %p379 = pneg %p159
        $region30: #{tpu_custom_call.1} parent=11 // pred_check_branch
          %381 = sbr.rel (%p379) target = $region32
        $region31: #{tpu_custom_call.1} parent=11 // pred_region
          %s383 = ssub.s32 8192, 8192
          %384 = vsyncadd [#allocation9], %s383
          %s385 = sshll.u32 [#allocation8], 4
          %s386 = int_to_ptr.vmem [resolvable:$true] %s385
          %391 = dma.hbm_to_vmem [thread:$0]  %s5, 8192, %s386, [#allocation9], 256, 256, 16
        $region32: #{tpu_custom_call.1} parent=11 // pred_fallthru
          _
        // Predicated region
        $region33: #{tpu_custom_call.1} parent=11 // pred_check
          %p392 = pneg %p180
        $region34: #{tpu_custom_call.1} parent=11 // pred_check_branch
          %394 = sbr.rel (%p392) target = $region36
        $region35: #{tpu_custom_call.1} parent=11 // pred_region
          _
        $region36: #{tpu_custom_call.1} parent=11 // pred_fallthru
          _
        // Predicated region
        $region37: #{tpu_custom_call.1} parent=11 // pred_check
          %p395 = pneg %p201
        $region38: #{tpu_custom_call.1} parent=11 // pred_check_branch
          %397 = sbr.rel (%p395) target = $region40
        $region39: #{tpu_custom_call.1} parent=11 // pred_region
          %s399 = ssub.s32 8192, 8192
          %400 = vsyncadd [#allocation9], %s399
          %s401 = sshll.u32 [#allocation10], 4
          %s402 = int_to_ptr.vmem [resolvable:$true] %s401
          %407 = dma.hbm_to_vmem [thread:$0]  %s7, 8192, %s402, [#allocation9], 128, 128, 8
        $region40: #{tpu_custom_call.1} parent=11 // pred_fallthru
          _
        // Predicated region
        $region41: #{tpu_custom_call.1} parent=11 // pred_check
          %p408 = pneg %p222
        $region42: #{tpu_custom_call.1} parent=11 // pred_check_branch
          %410 = sbr.rel (%p408) target = $region44
        $region43: #{tpu_custom_call.1} parent=11 // pred_region
          _
        $region44: #{tpu_custom_call.1} parent=11 // pred_fallthru
          _
        // Predicated region
        $region45: #{tpu_custom_call.1} parent=11 // pred_check
          %p411 = pneg %p243
        $region46: #{tpu_custom_call.1} parent=11 // pred_check_branch
          %413 = sbr.rel (%p411) target = $region48
        $region47: #{tpu_custom_call.1} parent=11 // pred_region
          %s415 = ssub.s32 2048, 2048
          %416 = vsyncadd [#allocation12], %s415
          %s417 = sshll.u32 [#allocation11], 4
          %s418 = int_to_ptr.vmem [resolvable:$true] %s417
          %423 = dma.hbm_to_vmem [thread:$0]  %s9, 2048, %s418, [#allocation12], 64, 64, 4
        $region48: #{tpu_custom_call.1} parent=11 // pred_fallthru
          _
        // Predicated region
        $region49: #{tpu_custom_call.1} parent=11 // pred_check
          %p424 = pneg %p264
        $region50: #{tpu_custom_call.1} parent=11 // pred_check_branch
          %426 = sbr.rel (%p424) target = $region52
        $region51: #{tpu_custom_call.1} parent=11 // pred_region
          _
        $region52: #{tpu_custom_call.1} parent=11 // pred_fallthru
          _
        // Predicated region
        $region53: #{tpu_custom_call.1} parent=11 // pred_check
          %p427 = pneg %p285
        $region54: #{tpu_custom_call.1} parent=11 // pred_check_branch
          %429 = sbr.rel (%p427) target = $region56
        $region55: #{tpu_custom_call.1} parent=11 // pred_region
          %s431 = ssub.s32 1024, 1024
          %432 = vsyncadd [#allocation12], %s431
          %s433 = sshll.u32 [#allocation13], 4
          %s434 = int_to_ptr.vmem [resolvable:$true] %s433
          %439 = dma.hbm_to_vmem [thread:$0]  %s11, 1024, %s434, [#allocation12], 64, 64, 4
        $region56: #{tpu_custom_call.1} parent=11 // pred_fallthru
          _
        // Predicated region
        $region57: #{tpu_custom_call.1} parent=11 // pred_check
          %p440 = pneg %p306
        $region58: #{tpu_custom_call.1} parent=11 // pred_check_branch
          %442 = sbr.rel (%p440) target = $region60
        $region59: #{tpu_custom_call.1} parent=11 // pred_region
          _
        $region60: #{tpu_custom_call.1} parent=11 // pred_fallthru
          _
      $region12: #{tpu_custom_call.1} parent=5 // pred_fallthru
        _
      %p443 = scmp.lt.s32.totalorder %s28, 2
      // Predicated region
      $region61: #{tpu_custom_call.1} parent=5 // pred_check
        %p444 = pneg %p443
      $region62: #{tpu_custom_call.1} parent=5 // pred_check_branch
        %446 = sbr.rel (%p444) target = $region64
      $region63: #{tpu_custom_call.1} parent=5 // pred_region
        // Predicated region
        $region65: #{tpu_custom_call.1} parent=63 // pred_check
          %p447 = pneg %p48
        $region66: #{tpu_custom_call.1} parent=63 // pred_check_branch
          %449 = sbr.rel (%p447) target = $region68
        $region67: #{tpu_custom_call.1} parent=63 // pred_region
          %s450 = sand.u32 %s38, 1
          %s451 = scalar_lea.sflag [#allocation3], %s450
          %s452 = sand.u32 %s38, 1
          %s453 = smul.addr %s452, 128
          %s454 = scalar_lea.vmem [#allocation2], %s453
          %s455 = smul.u32 16, %s28
          %s457 = ssub.s32 2048, 2048
          %458 = vsyncadd %s451, %s457
          %s459 = smul.addr %s455, 128
          %s460 = scalar_lea.hbm %s0, %s459
          %s461 = sshll.u32 %s454, 4
          %s462 = int_to_ptr.vmem [resolvable:$true] %s461
          %467 = dma.hbm_to_vmem [thread:$0]  %s460, 2048, %s462, %s451, 128, 128, 8
        $region68: #{tpu_custom_call.1} parent=63 // pred_fallthru
          _
      $region64: #{tpu_custom_call.1} parent=5 // pred_fallthru
        _
      %p468 = scmp.le.s32.totalorder 1, %s28
      %p469 = scmp.lt.s32.totalorder %s28, 3
      %p470 = pnand %p468, %p469
      %p471 = pneg %p470
      // Predicated region
      $region69: #{tpu_custom_call.1} parent=5 // pred_check
        _
      $region70: #{tpu_custom_call.1} parent=5 // pred_check_branch
        %473 = sbr.rel (%p470) target = $region72
      $region71: #{tpu_custom_call.1} parent=5 // pred_region
        %s474 = ssub.s32 %s28, 1
        %s475 = sand.u32 %s41, 1
        %s476 = scalar_lea.sflag [#allocation3], %s475
        %s477 = sand.u32 %s41, 1
        %s478 = smul.addr %s477, 128
        %s479 = scalar_lea.vmem [#allocation2], %s478
        // Predicated region
        $region73: #{tpu_custom_call.1} parent=71 // pred_check
          %p480 = pneg %p54
        $region74: #{tpu_custom_call.1} parent=71 // pred_check_branch
          %482 = sbr.rel (%p480) target = $region76
        $region75: #{tpu_custom_call.1} parent=71 // pred_region
          %483 = dma.done %s476, 2048
        $region76: #{tpu_custom_call.1} parent=71 // pred_fallthru
          _
        // Predicated region
        $region77: #{tpu_custom_call.1} parent=71 // pred_check
          %p484 = pneg %p75
        $region78: #{tpu_custom_call.1} parent=71 // pred_check_branch
          %486 = sbr.rel (%p484) target = $region80
        $region79: #{tpu_custom_call.1} parent=71 // pred_region
          %487 = dma.done [#allocation6], 1024
        $region80: #{tpu_custom_call.1} parent=71 // pred_fallthru
          _
        // Predicated region
        $region81: #{tpu_custom_call.1} parent=71 // pred_check
          %p488 = pneg %p117
        $region82: #{tpu_custom_call.1} parent=71 // pred_check_branch
          %490 = sbr.rel (%p488) target = $region84
        $region83: #{tpu_custom_call.1} parent=71 // pred_region
          %491 = dma.done [#allocation6], 2048
        $region84: #{tpu_custom_call.1} parent=71 // pred_fallthru
          _
        // Predicated region
        $region85: #{tpu_custom_call.1} parent=71 // pred_check
          %p492 = pneg %p159
        $region86: #{tpu_custom_call.1} parent=71 // pred_check_branch
          %494 = sbr.rel (%p492) target = $region88
        $region87: #{tpu_custom_call.1} parent=71 // pred_region
          %495 = dma.done [#allocation9], 8192
        $region88: #{tpu_custom_call.1} parent=71 // pred_fallthru
          _
        // Predicated region
        $region89: #{tpu_custom_call.1} parent=71 // pred_check
          %p496 = pneg %p201
        $region90: #{tpu_custom_call.1} parent=71 // pred_check_branch
          %498 = sbr.rel (%p496) target = $region92
        $region91: #{tpu_custom_call.1} parent=71 // pred_region
          %499 = dma.done [#allocation9], 8192
        $region92: #{tpu_custom_call.1} parent=71 // pred_fallthru
          _
        // Predicated region
        $region93: #{tpu_custom_call.1} parent=71 // pred_check
          %p500 = pneg %p243
        $region94: #{tpu_custom_call.1} parent=71 // pred_check_branch
          %502 = sbr.rel (%p500) target = $region96
        $region95: #{tpu_custom_call.1} parent=71 // pred_region
          %503 = dma.done [#allocation12], 2048
        $region96: #{tpu_custom_call.1} parent=71 // pred_fallthru
          _
        // Predicated region
        $region97: #{tpu_custom_call.1} parent=71 // pred_check
          %p504 = pneg %p285
        $region98: #{tpu_custom_call.1} parent=71 // pred_check_branch
          %506 = sbr.rel (%p504) target = $region100
        $region99: #{tpu_custom_call.1} parent=71 // pred_region
          %507 = dma.done [#allocation12], 1024
        $region100: #{tpu_custom_call.1} parent=71 // pred_fallthru
          _
        %s508 = sand.u32 %s41, 1
        %s509 = scalar_lea.sflag [#allocation3], %s508
        %s510 = sand.u32 %s41, 1
        %s511 = smul.addr %s510, 128
        %s512 = scalar_lea.vmem [#allocation2], %s511
        %p513 = pneg %p54
        %p514 = pneg %p51
        %p515 = pneg %p75
        %p516 = pneg %p72
        %p517 = pneg %p96
        %p518 = pneg %p93
        %p519 = pneg %p117
        %p520 = pneg %p114
        %p521 = pneg %p138
        %p522 = pneg %p135
        %p523 = pneg %p159
        %p524 = pneg %p156
        %p525 = pneg %p180
        %p526 = pneg %p177
        %p527 = pneg %p201
        %p528 = pneg %p198
        %p529 = pneg %p222
        %p530 = pneg %p219
        %p531 = pneg %p243
        %p532 = pneg %p240
        %p533 = pneg %p264
        %p534 = pneg %p261
        %p535 = pneg %p285
        %p536 = pneg %p282
        %p537 = pneg %p306
        %p538 = pneg %p303
        %p539 = pneg %p332
        %p540 = pneg %p329
        %s541 = sand.u32 %s319, 1
        %s542 = scalar_lea.sflag [#allocation4], %s541
        %s543 = sand.u32 %s319, 1
        %s544 = smul.addr %s543, 128
        %s545 = scalar_lea.vmem [#allocation14], %s544
        %s546 = smul.u32 16, %s33
        %s547 = smul.u32 16, %s33
        %v549 = vld [vmem:[%s479] sm:$0xff]
        %v550 = vld [vmem:[%s479 + $0x8] sm:$0xff]
        %v551 = vld [vmem:[%s479 + $0x10] sm:$0xff]
        %v552 = vld [vmem:[%s479 + $0x18] sm:$0xff]
        %v553 = vld [vmem:[%s479 + $0x20] sm:$0xff]
        %v554 = vld [vmem:[%s479 + $0x28] sm:$0xff]
        %v555 = vld [vmem:[%s479 + $0x30] sm:$0xff]
        %v556 = vld [vmem:[%s479 + $0x38] sm:$0xff]
        %v557 = vld [vmem:[%s479 + $0x40] sm:$0xff]
        %v558 = vld [vmem:[%s479 + $0x48] sm:$0xff]
        %v559 = vld [vmem:[%s479 + $0x50] sm:$0xff]
        %v560 = vld [vmem:[%s479 + $0x58] sm:$0xff]
        %v561 = vld [vmem:[%s479 + $0x60] sm:$0xff]
        %v562 = vld [vmem:[%s479 + $0x68] sm:$0xff]
        %v563 = vld [vmem:[%s479 + $0x70] sm:$0xff]
        %v564 = vld [vmem:[%s479 + $0x78] sm:$0xff]
        %v565 = vpack.c.bf16 %v550, %v549
        %v566 = vpack.c.bf16 %v552, %v551
        %v567 = vpack.c.bf16 %v554, %v553
        %v568 = vpack.c.bf16 %v556, %v555
        %v569 = vpack.c.bf16 %v558, %v557
        %v570 = vpack.c.bf16 %v560, %v559
        %v571 = vpack.c.bf16 %v562, %v561
        %v572 = vpack.c.bf16 %v564, %v563
        %v573 = vld [vmem:[#allocation5] sm:$0xf]
        %v574 = vld [vmem:[#allocation5 + $0x4] sm:$0xf]
        %v575 = vld [vmem:[#allocation5 + $0x8] sm:$0xf]
        %v576 = vld [vmem:[#allocation5 + $0xc] sm:$0xf]
        %v577 = vld [vmem:[#allocation5 + $0x10] sm:$0xf]
        %v578 = vld [vmem:[#allocation5 + $0x14] sm:$0xf]
        %v579 = vld [vmem:[#allocation5 + $0x18] sm:$0xf]
        %v580 = vld [vmem:[#allocation5 + $0x1c] sm:$0xf]
        %v581 = vld [vmem:[#allocation5 + $0x20] sm:$0xf]
        %v582 = vld [vmem:[#allocation5 + $0x24] sm:$0xf]
        %v583 = vld [vmem:[#allocation5 + $0x28] sm:$0xf]
        %v584 = vld [vmem:[#allocation5 + $0x2c] sm:$0xf]
        %v585 = vld [vmem:[#allocation5 + $0x30] sm:$0xf]
        %v586 = vld [vmem:[#allocation5 + $0x34] sm:$0xf]
        %v587 = vld [vmem:[#allocation5 + $0x38] sm:$0xf]
        %v588 = vld [vmem:[#allocation5 + $0x3c] sm:$0xf]
        %v589 = vld [vmem:[%s2] sm:$0x1]
        %v591 = vlaneseq
        %v592 = vshrl.u32 %v591, 7
        %v593 = vsub.s32 0, %v592
        %v594 = vrot.slane %v589, %v593
        %v612 = vunpack.c.l.b16 %v573
        %v613 = vunpack.c.l.b16 %v574
        %v614 = vunpack.c.l.b16 %v575
        %v615 = vunpack.c.l.b16 %v576
        %v616 = vunpack.c.l.b16 %v577
        %v617 = vunpack.c.l.b16 %v578
        %v618 = vunpack.c.l.b16 %v579
        %v619 = vunpack.c.l.b16 %v580
        %v620 = vunpack.c.l.b16 %v581
        %v621 = vunpack.c.l.b16 %v582
        %v622 = vunpack.c.l.b16 %v583
        %v623 = vunpack.c.l.b16 %v584
        %v624 = vunpack.c.l.b16 %v585
        %v625 = vunpack.c.l.b16 %v586
        %v626 = vunpack.c.l.b16 %v587
        %v627 = vunpack.c.l.b16 %v588
        %v628 = vpack.c.b16 %v613, %v612
        %v629 = vpack.c.b16 %v615, %v614
        %v630 = vpack.c.b16 %v617, %v616
        %v631 = vpack.c.b16 %v619, %v618
        %v632 = vpack.c.b16 %v621, %v620
        %v633 = vpack.c.b16 %v623, %v622
        %v634 = vpack.c.b16 %v625, %v624
        %v635 = vpack.c.b16 %v627, %v626
        %644 = vmatprep.subr.bf16.mxu0 0
        %645 = vmatpush1.bf16.msra.mxu0 %v628
        %646 = vmatprep.subr.bf16.mxu0 0
        %647 = vmatpush1.bf16.msra.mxu0 %v629
        %648 = vmatprep.subr.bf16.mxu0 0
        %649 = vmatpush1.bf16.msra.mxu0 %v630
        %650 = vmatprep.subr.bf16.mxu0 0
        %651 = vmatpush1.bf16.msra.mxu0 %v631
        %652 = vmatprep.subr.bf16.mxu0 0
        %653 = vmatpush1.bf16.msra.mxu0 %v632
        %654 = vmatprep.subr.bf16.mxu0 0
        %655 = vmatpush1.bf16.msra.mxu0 %v633
        %656 = vmatprep.subr.bf16.mxu0 0
        %657 = vmatpush1.bf16.msra.mxu0 %v634
        %658 = vmatprep.subr.bf16.mxu0 0
        %659 = vmatpush1.bf16.msra.mxu0 %v635
        %660 = vmatprep.subr.bf16.mxu0 0
        %661 = vmatpush1.bf16.msra.mxu0 0
        %662 = vmatprep.subr.bf16.mxu0 0
        %663 = vmatpush1.bf16.msra.mxu0 0
        %664 = vmatprep.subr.bf16.mxu0 0
        %665 = vmatpush1.bf16.msra.mxu0 0
        %666 = vmatprep.subr.bf16.mxu0 0
        %667 = vmatpush1.bf16.msra.mxu0 0
        %668 = vmatprep.subr.bf16.mxu0 0
        %669 = vmatpush1.bf16.msra.mxu0 0
        %670 = vmatprep.subr.bf16.mxu0 0
        %671 = vmatpush1.bf16.msra.mxu0 0
        %672 = vmatprep.subr.bf16.mxu0 0
        %673 = vmatpush1.bf16.msra.mxu0 0
        %674 = vmatprep.subr.bf16.mxu0 0
        %675 = vmatpush1.bf16.msra.mxu0 0
        %676 = vmatprep.mubr.bf16.mxu0 0
        %677 = vmatmul.mubr.bf16.gmra.mrb[0].mxu0 %v565
        %v678 = vpop.f32.mrb[0].mxu0
        %v679 = vadd.f32 %v594, %v678
        %v680 = vpop.f32.mrb[0].mxu0
        %v681 = vpop.f32.mrb[0].mxu0
        %v682 = vadd.f32 %v594, %v681
        %v683 = vpop.f32.mrb[0].mxu0
        %684 = vmatprep.mubr.bf16.mxu0 0
        %685 = vmatmul.mubr.bf16.gmra.mrb[0].mxu0 %v566
        %v686 = vpop.f32.mrb[0].mxu0
        %v687 = vadd.f32 %v594, %v686
        %v688 = vpop.f32.mrb[0].mxu0
        %v689 = vpop.f32.mrb[0].mxu0
        %v690 = vadd.f32 %v594, %v689
        %v691 = vpop.f32.mrb[0].mxu0
        %692 = vmatprep.mubr.bf16.mxu0 0
        %693 = vmatmul.mubr.bf16.gmra.mrb[0].mxu0 %v567
        %v694 = vpop.f32.mrb[0].mxu0
        %v695 = vadd.f32 %v594, %v694
        %v696 = vpop.f32.mrb[0].mxu0
        %v697 = vpop.f32.mrb[0].mxu0
        %v698 = vadd.f32 %v594, %v697
        %v699 = vpop.f32.mrb[0].mxu0
        %700 = vmatprep.mubr.bf16.mxu0 0
        %701 = vmatmul.mubr.bf16.gmra.mrb[0].mxu0 %v568
        %v702 = vpop.f32.mrb[0].mxu0
        %v703 = vadd.f32 %v594, %v702
        %v704 = vpop.f32.mrb[0].mxu0
        %v705 = vpop.f32.mrb[0].mxu0
        %v706 = vadd.f32 %v594, %v705
        %v707 = vpop.f32.mrb[0].mxu0
        %708 = vmatprep.mubr.bf16.mxu0 0
        %709 = vmatmul.mubr.bf16.gmra.mrb[0].mxu0 %v569
        %v710 = vpop.f32.mrb[0].mxu0
        %v711 = vadd.f32 %v594, %v710
        %v712 = vpop.f32.mrb[0].mxu0
        %v713 = vpop.f32.mrb[0].mxu0
        %v714 = vadd.f32 %v594, %v713
        %v715 = vpop.f32.mrb[0].mxu0
        %716 = vmatprep.mubr.bf16.mxu0 0
        %717 = vmatmul.mubr.bf16.gmra.mrb[0].mxu0 %v570
        %v718 = vpop.f32.mrb[0].mxu0
        %v719 = vadd.f32 %v594, %v718
        %v720 = vpop.f32.mrb[0].mxu0
        %v721 = vpop.f32.mrb[0].mxu0
        %v722 = vadd.f32 %v594, %v721
        %v723 = vpop.f32.mrb[0].mxu0
        %724 = vmatprep.mubr.bf16.mxu0 0
        %725 = vmatmul.mubr.bf16.gmra.mrb[0].mxu0 %v571
        %v726 = vpop.f32.mrb[0].mxu0
        %v727 = vadd.f32 %v594, %v726
        %v728 = vpop.f32.mrb[0].mxu0
        %v729 = vpop.f32.mrb[0].mxu0
        %v730 = vadd.f32 %v594, %v729
        %v731 = vpop.f32.mrb[0].mxu0
        %732 = vmatprep.mubr.bf16.mxu0 0
        %733 = vmatmul.mubr.bf16.gmra.mrb[0].mxu0 %v572
        %v734 = vpop.f32.mrb[0].mxu0
        %v735 = vadd.f32 %v594, %v734
        %v736 = vpop.f32.mrb[0].mxu0
        %v737 = vpop.f32.mrb[0].mxu0
        %v738 = vadd.f32 %v594, %v737
        %v739 = vpop.f32.mrb[0].mxu0
        %740 = vdwg.mxu0
        %v741 = vmax.f32 %v679, 0.0
        %v742 = vmax.f32 %v682, 0.0
        %v743 = vmax.f32 %v687, 0.0
        %v744 = vmax.f32 %v690, 0.0
        %v745 = vmax.f32 %v695, 0.0
        %v746 = vmax.f32 %v698, 0.0
        %v747 = vmax.f32 %v703, 0.0
        %v748 = vmax.f32 %v706, 0.0
        %v749 = vmax.f32 %v711, 0.0
        %v750 = vmax.f32 %v714, 0.0
        %v751 = vmax.f32 %v719, 0.0
        %v752 = vmax.f32 %v722, 0.0
        %v753 = vmax.f32 %v727, 0.0
        %v754 = vmax.f32 %v730, 0.0
        %v755 = vmax.f32 %v735, 0.0
        %v756 = vmax.f32 %v738, 0.0
        %v757 = vpack.c.bf16 %v742, %v741
        %v758 = vpack.c.bf16 %v744, %v743
        %v759 = vpack.c.bf16 %v746, %v745
        %v760 = vpack.c.bf16 %v748, %v747
        %v761 = vpack.c.bf16 %v750, %v749
        %v762 = vpack.c.bf16 %v752, %v751
        %v763 = vpack.c.bf16 %v754, %v753
        %v764 = vpack.c.bf16 %v756, %v755
        %v765 = vld [vmem:[#allocation7] sm:$0xff]
        %v766 = vld [vmem:[#allocation7 + $0x8] sm:$0xff]
        %v767 = vld [vmem:[#allocation7 + $0x10] sm:$0xff]
        %v768 = vld [vmem:[#allocation7 + $0x18] sm:$0xff]
        %v769 = vld [vmem:[#allocation7 + $0x20] sm:$0xff]
        %v770 = vld [vmem:[#allocation7 + $0x28] sm:$0xff]
        %v771 = vld [vmem:[#allocation7 + $0x30] sm:$0xff]
        %v772 = vld [vmem:[#allocation7 + $0x38] sm:$0xff]
        %v773 = vld [vmem:[#allocation7 + $0x40] sm:$0xff]
        %v774 = vld [vmem:[#allocation7 + $0x48] sm:$0xff]
        %v775 = vld [vmem:[#allocation7 + $0x50] sm:$0xff]
        %v776 = vld [vmem:[#allocation7 + $0x58] sm:$0xff]
        %v777 = vld [vmem:[#allocation7 + $0x60] sm:$0xff]
        %v778 = vld [vmem:[#allocation7 + $0x68] sm:$0xff]
        %v779 = vld [vmem:[#allocation7 + $0x70] sm:$0xff]
        %v780 = vld [vmem:[#allocation7 + $0x78] sm:$0xff]
        %v781 = vld [vmem:[%s4] sm:$0x3]
        %v783 = vlaneseq
        %v784 = vshrl.u32 %v783, 7
        %v785 = vsub.s32 0, %v784
        %v786 = vrot.slane %v781, %v785
        %v787 = vlaneseq
        %v788 = vshrl.u32 %v787, 7
        %v789 = vsub.s32 1, %v788
        %v790 = vrot.slane %v781, %v789
        %v809 = vunpack.c.l.b16 %v765
        %v810 = vunpack.c.h.b16 %v765
        %v811 = vunpack.c.l.b16 %v766
        %v812 = vunpack.c.h.b16 %v766
        %v813 = vunpack.c.l.b16 %v767
        %v814 = vunpack.c.h.b16 %v767
        %v815 = vunpack.c.l.b16 %v768
        %v816 = vunpack.c.h.b16 %v768
        %v817 = vunpack.c.l.b16 %v769
        %v818 = vunpack.c.h.b16 %v769
        %v819 = vunpack.c.l.b16 %v770
        %v820 = vunpack.c.h.b16 %v770
        %v821 = vunpack.c.l.b16 %v771
        %v822 = vunpack.c.h.b16 %v771
        %v823 = vunpack.c.l.b16 %v772
        %v824 = vunpack.c.h.b16 %v772
        %v825 = vunpack.c.l.b16 %v773
        %v826 = vunpack.c.h.b16 %v773
        %v827 = vunpack.c.l.b16 %v774
        %v828 = vunpack.c.h.b16 %v774
        %v829 = vunpack.c.l.b16 %v775
        %v830 = vunpack.c.h.b16 %v775
        %v831 = vunpack.c.l.b16 %v776
        %v832 = vunpack.c.h.b16 %v776
        %v833 = vunpack.c.l.b16 %v777
        %v834 = vunpack.c.h.b16 %v777
        %v835 = vunpack.c.l.b16 %v778
        %v836 = vunpack.c.h.b16 %v778
        %v837 = vunpack.c.l.b16 %v779
        %v838 = vunpack.c.h.b16 %v779
        %v839 = vunpack.c.l.b16 %v780
        %v840 = vunpack.c.h.b16 %v780
        %v841 = vpack.c.b16 %v811, %v809
        %v842 = vpack.c.b16 %v812, %v810
        %v843 = vpack.c.b16 %v815, %v813
        %v844 = vpack.c.b16 %v816, %v814
        %v845 = vpack.c.b16 %v819, %v817
        %v846 = vpack.c.b16 %v820, %v818
        %v847 = vpack.c.b16 %v823, %v821
        %v848 = vpack.c.b16 %v824, %v822
        %v849 = vpack.c.b16 %v827, %v825
        %v850 = vpack.c.b16 %v828, %v826
        %v851 = vpack.c.b16 %v831, %v829
        %v852 = vpack.c.b16 %v832, %v830
        %v853 = vpack.c.b16 %v835, %v833
        %v854 = vpack.c.b16 %v836, %v834
        %v855 = vpack.c.b16 %v839, %v837
        %v856 = vpack.c.b16 %v840, %v838
        %873 = vmatprep.subr.bf16.mxu0 %v842
        %874 = vmatpush1.bf16.msra.mxu0 %v841
        %875 = vmatprep.subr.bf16.mxu0 %v844
        %876 = vmatpush1.bf16.msra.mxu0 %v843
        %877 = vmatprep.subr.bf16.mxu0 %v846
        %878 = vmatpush1.bf16.msra.mxu0 %v845
        %879 = vmatprep.subr.bf16.mxu0 %v848
        %880 = vmatpush1.bf16.msra.mxu0 %v847
        %881 = vmatprep.subr.bf16.mxu0 %v850
        %882 = vmatpush1.bf16.msra.mxu0 %v849
        %883 = vmatprep.subr.bf16.mxu0 %v852
        %884 = vmatpush1.bf16.msra.mxu0 %v851
        %885 = vmatprep.subr.bf16.mxu0 %v854
        %886 = vmatpush1.bf16.msra.mxu0 %v853
        %887 = vmatprep.subr.bf16.mxu0 %v856
        %888 = vmatpush1.bf16.msra.mxu0 %v855
        %889 = vmatprep.subr.bf16.mxu0 0
        %890 = vmatpush1.bf16.msra.mxu0 0
        %891 = vmatprep.subr.bf16.mxu0 0
        %892 = vmatpush1.bf16.msra.mxu0 0
        %893 = vmatprep.subr.bf16.mxu0 0
        %894 = vmatpush1.bf16.msra.mxu0 0
        %895 = vmatprep.subr.bf16.mxu0 0
        %896 = vmatpush1.bf16.msra.mxu0 0
        %897 = vmatprep.subr.bf16.mxu0 0
        %898 = vmatpush1.bf16.msra.mxu0 0
        %899 = vmatprep.subr.bf16.mxu0 0
        %900 = vmatpush1.bf16.msra.mxu0 0
        %901 = vmatprep.subr.bf16.mxu0 0
        %902 = vmatpush1.bf16.msra.mxu0 0
        %903 = vmatprep.subr.bf16.mxu0 0
        %904 = vmatpush1.bf16.msra.mxu0 0
        %905 = vmatprep.mubr.bf16.mxu0 0
        %906 = vmatmul.mubr.bf16.gmra.mrb[0].mxu0 %v757
        %v907 = vpop.f32.mrb[0].mxu0
        %v908 = vadd.f32 %v786, %v907
        %v909 = vpop.f32.mrb[0].mxu0
        %v910 = vadd.f32 %v790, %v909
        %v911 = vpop.f32.mrb[0].mxu0
        %v912 = vadd.f32 %v786, %v911
        %v913 = vpop.f32.mrb[0].mxu0
        %v914 = vadd.f32 %v790, %v913
        %915 = vmatprep.mubr.bf16.mxu0 0
        %916 = vmatmul.mubr.bf16.gmra.mrb[0].mxu0 %v758
        %v917 = vpop.f32.mrb[0].mxu0
        %v918 = vadd.f32 %v786, %v917
        %v919 = vpop.f32.mrb[0].mxu0
        %v920 = vadd.f32 %v790, %v919
        %v921 = vpop.f32.mrb[0].mxu0
        %v922 = vadd.f32 %v786, %v921
        %v923 = vpop.f32.mrb[0].mxu0
        %v924 = vadd.f32 %v790, %v923
        %925 = vmatprep.mubr.bf16.mxu0 0
        %926 = vmatmul.mubr.bf16.gmra.mrb[0].mxu0 %v759
        %v927 = vpop.f32.mrb[0].mxu0
        %v928 = vadd.f32 %v786, %v927
        %v929 = vpop.f32.mrb[0].mxu0
        %v930 = vadd.f32 %v790, %v929
        %v931 = vpop.f32.mrb[0].mxu0
        %v932 = vadd.f32 %v786, %v931
        %v933 = vpop.f32.mrb[0].mxu0
        %v934 = vadd.f32 %v790, %v933
        %935 = vmatprep.mubr.bf16.mxu0 0
        %936 = vmatmul.mubr.bf16.gmra.mrb[0].mxu0 %v760
        %v937 = vpop.f32.mrb[0].mxu0
        %v938 = vadd.f32 %v786, %v937
        %v939 = vpop.f32.mrb[0].mxu0
        %v940 = vadd.f32 %v790, %v939
        %v941 = vpop.f32.mrb[0].mxu0
        %v942 = vadd.f32 %v786, %v941
        %v943 = vpop.f32.mrb[0].mxu0
        %v944 = vadd.f32 %v790, %v943
        %945 = vmatprep.mubr.bf16.mxu0 0
        %946 = vmatmul.mubr.bf16.gmra.mrb[0].mxu0 %v761
        %v947 = vpop.f32.mrb[0].mxu0
        %v948 = vadd.f32 %v786, %v947
        %v949 = vpop.f32.mrb[0].mxu0
        %v950 = vadd.f32 %v790, %v949
        %v951 = vpop.f32.mrb[0].mxu0
        %v952 = vadd.f32 %v786, %v951
        %v953 = vpop.f32.mrb[0].mxu0
        %v954 = vadd.f32 %v790, %v953
        %955 = vmatprep.mubr.bf16.mxu0 0
        %956 = vmatmul.mubr.bf16.gmra.mrb[0].mxu0 %v762
        %v957 = vpop.f32.mrb[0].mxu0
        %v958 = vadd.f32 %v786, %v957
        %v959 = vpop.f32.mrb[0].mxu0
        %v960 = vadd.f32 %v790, %v959
        %v961 = vpop.f32.mrb[0].mxu0
        %v962 = vadd.f32 %v786, %v961
        %v963 = vpop.f32.mrb[0].mxu0
        %v964 = vadd.f32 %v790, %v963
        %965 = vmatprep.mubr.bf16.mxu0 0
        %966 = vmatmul.mubr.bf16.gmra.mrb[0].mxu0 %v763
        %v967 = vpop.f32.mrb[0].mxu0
        %v968 = vadd.f32 %v786, %v967
        %v969 = vpop.f32.mrb[0].mxu0
        %v970 = vadd.f32 %v790, %v969
        %v971 = vpop.f32.mrb[0].mxu0
        %v972 = vadd.f32 %v786, %v971
        %v973 = vpop.f32.mrb[0].mxu0
        %v974 = vadd.f32 %v790, %v973
        %975 = vmatprep.mubr.bf16.mxu0 0
        %976 = vmatmul.mubr.bf16.gmra.mrb[0].mxu0 %v764
        %v977 = vpop.f32.mrb[0].mxu0
        %v978 = vadd.f32 %v786, %v977
        %v979 = vpop.f32.mrb[0].mxu0
        %v980 = vadd.f32 %v790, %v979
        %v981 = vpop.f32.mrb[0].mxu0
        %v982 = vadd.f32 %v786, %v981
        %v983 = vpop.f32.mrb[0].mxu0
        %v984 = vadd.f32 %v790, %v983
        %985 = vdwg.mxu0
        %v986 = vmax.f32 %v908, 0.0
        %v987 = vmax.f32 %v910, 0.0
        %v988 = vmax.f32 %v912, 0.0
        %v989 = vmax.f32 %v914, 0.0
        %v990 = vmax.f32 %v918, 0.0
        %v991 = vmax.f32 %v920, 0.0
        %v992 = vmax.f32 %v922, 0.0
        %v993 = vmax.f32 %v924, 0.0
        %v994 = vmax.f32 %v928, 0.0
        %v995 = vmax.f32 %v930, 0.0
        %v996 = vmax.f32 %v932, 0.0
        %v997 = vmax.f32 %v934, 0.0
        %v998 = vmax.f32 %v938, 0.0
        %v999 = vmax.f32 %v940, 0.0
        %v1000 = vmax.f32 %v942, 0.0
        %v1001 = vmax.f32 %v944, 0.0
        %v1002 = vmax.f32 %v948, 0.0
        %v1003 = vmax.f32 %v950, 0.0
        %v1004 = vmax.f32 %v952, 0.0
        %v1005 = vmax.f32 %v954, 0.0
        %v1006 = vmax.f32 %v958, 0.0
        %v1007 = vmax.f32 %v960, 0.0
        %v1008 = vmax.f32 %v962, 0.0
        %v1009 = vmax.f32 %v964, 0.0
        %v1010 = vmax.f32 %v968, 0.0
        %v1011 = vmax.f32 %v970, 0.0
        %v1012 = vmax.f32 %v972, 0.0
        %v1013 = vmax.f32 %v974, 0.0
        %v1014 = vmax.f32 %v978, 0.0
        %v1015 = vmax.f32 %v980, 0.0
        %v1016 = vmax.f32 %v982, 0.0
        %v1017 = vmax.f32 %v984, 0.0
        %v1018 = vpack.c.bf16 %v988, %v986
        %v1019 = vpack.c.bf16 %v989, %v987
        %v1020 = vpack.c.bf16 %v992, %v990
        %v1021 = vpack.c.bf16 %v993, %v991
        %v1022 = vpack.c.bf16 %v996, %v994
        %v1023 = vpack.c.bf16 %v997, %v995
        %v1024 = vpack.c.bf16 %v1000, %v998
        %v1025 = vpack.c.bf16 %v1001, %v999
        %v1026 = vpack.c.bf16 %v1004, %v1002
        %v1027 = vpack.c.bf16 %v1005, %v1003
        %v1028 = vpack.c.bf16 %v1008, %v1006
        %v1029 = vpack.c.bf16 %v1009, %v1007
        %v1030 = vpack.c.bf16 %v1012, %v1010
        %v1031 = vpack.c.bf16 %v1013, %v1011
        %v1032 = vpack.c.bf16 %v1016, %v1014
        %v1033 = vpack.c.bf16 %v1017, %v1015
        %v1034 = vld [vmem:[#allocation8] sm:$0xff]
        %v1035 = vld [vmem:[#allocation8 + $0x8] sm:$0xff]
        %v1036 = vld [vmem:[#allocation8 + $0x10] sm:$0xff]
        %v1037 = vld [vmem:[#allocation8 + $0x18] sm:$0xff]
        %v1038 = vld [vmem:[#allocation8 + $0x20] sm:$0xff]
        %v1039 = vld [vmem:[#allocation8 + $0x28] sm:$0xff]
        %v1040 = vld [vmem:[#allocation8 + $0x30] sm:$0xff]
        %v1041 = vld [vmem:[#allocation8 + $0x38] sm:$0xff]
        %v1042 = vld [vmem:[#allocation8 + $0x40] sm:$0xff]
        %v1043 = vld [vmem:[#allocation8 + $0x48] sm:$0xff]
        %v1044 = vld [vmem:[#allocation8 + $0x50] sm:$0xff]
        %v1045 = vld [vmem:[#allocation8 + $0x58] sm:$0xff]
        %v1046 = vld [vmem:[#allocation8 + $0x60] sm:$0xff]
        %v1047 = vld [vmem:[#allocation8 + $0x68] sm:$0xff]
        %v1048 = vld [vmem:[#allocation8 + $0x70] sm:$0xff]
        %v1049 = vld [vmem:[#allocation8 + $0x78] sm:$0xff]
        %v1050 = vld [vmem:[#allocation8 + $0x80] sm:$0xff]
        %v1051 = vld [vmem:[#allocation8 + $0x88] sm:$0xff]
        %v1052 = vld [vmem:[#allocation8 + $0x90] sm:$0xff]
        %v1053 = vld [vmem:[#allocation8 + $0x98] sm:$0xff]
        %v1054 = vld [vmem:[#allocation8 + $0xa0] sm:$0xff]
        %v1055 = vld [vmem:[#allocation8 + $0xa8] sm:$0xff]
        %v1056 = vld [vmem:[#allocation8 + $0xb0] sm:$0xff]
        %v1057 = vld [vmem:[#allocation8 + $0xb8] sm:$0xff]
        %v1058 = vld [vmem:[#allocation8 + $0xc0] sm:$0xff]
        %v1059 = vld [vmem:[#allocation8 + $0xc8] sm:$0xff]
        %v1060 = vld [vmem:[#allocation8 + $0xd0] sm:$0xff]
        %v1061 = vld [vmem:[#allocation8 + $0xd8] sm:$0xff]
        %v1062 = vld [vmem:[#allocation8 + $0xe0] sm:$0xff]
        %v1063 = vld [vmem:[#allocation8 + $0xe8] sm:$0xff]
        %v1064 = vld [vmem:[#allocation8 + $0xf0] sm:$0xff]
        %v1065 = vld [vmem:[#allocation8 + $0xf8] sm:$0xff]
        %v1066 = vld [vmem:[#allocation8 + $0x100] sm:$0xff]
        %v1067 = vld [vmem:[#allocation8 + $0x108] sm:$0xff]
        %v1068 = vld [vmem:[#allocation8 + $0x110] sm:$0xff]
        %v1069 = vld [vmem:[#allocation8 + $0x118] sm:$0xff]
        %v1070 = vld [vmem:[#allocation8 + $0x120] sm:$0xff]
        %v1071 = vld [vmem:[#allocation8 + $0x128] sm:$0xff]
        %v1072 = vld [vmem:[#allocation8 + $0x130] sm:$0xff]
        %v1073 = vld [vmem:[#allocation8 + $0x138] sm:$0xff]
        %v1074 = vld [vmem:[#allocation8 + $0x140] sm:$0xff]
        %v1075 = vld [vmem:[#allocation8 + $0x148] sm:$0xff]
        %v1076 = vld [vmem:[#allocation8 + $0x150] sm:$0xff]
        %v1077 = vld [vmem:[#allocation8 + $0x158] sm:$0xff]
        %v1078 = vld [vmem:[#allocation8 + $0x160] sm:$0xff]
        %v1079 = vld [vmem:[#allocation8 + $0x168] sm:$0xff]
        %v1080 = vld [vmem:[#allocation8 + $0x170] sm:$0xff]
        %v1081 = vld [vmem:[#allocation8 + $0x178] sm:$0xff]
        %v1082 = vld [vmem:[#allocation8 + $0x180] sm:$0xff]
        %v1083 = vld [vmem:[#allocation8 + $0x188] sm:$0xff]
        %v1084 = vld [vmem:[#allocation8 + $0x190] sm:$0xff]
        %v1085 = vld [vmem:[#allocation8 + $0x198] sm:$0xff]
        %v1086 = vld [vmem:[#allocation8 + $0x1a0] sm:$0xff]
        %v1087 = vld [vmem:[#allocation8 + $0x1a8] sm:$0xff]
        %v1088 = vld [vmem:[#allocation8 + $0x1b0] sm:$0xff]
        %v1089 = vld [vmem:[#allocation8 + $0x1b8] sm:$0xff]
        %v1090 = vld [vmem:[#allocation8 + $0x1c0] sm:$0xff]
        %v1091 = vld [vmem:[#allocation8 + $0x1c8] sm:$0xff]
        %v1092 = vld [vmem:[#allocation8 + $0x1d0] sm:$0xff]
        %v1093 = vld [vmem:[#allocation8 + $0x1d8] sm:$0xff]
        %v1094 = vld [vmem:[#allocation8 + $0x1e0] sm:$0xff]
        %v1095 = vld [vmem:[#allocation8 + $0x1e8] sm:$0xff]
        %v1096 = vld [vmem:[#allocation8 + $0x1f0] sm:$0xff]
        %v1097 = vld [vmem:[#allocation8 + $0x1f8] sm:$0xff]
        %v1098 = vld [vmem:[%s6] sm:$0xf]
        %v1100 = vlaneseq
        %v1101 = vshrl.u32 %v1100, 7
        %v1102 = vsub.s32 0, %v1101
        %v1103 = vrot.slane %v1098, %v1102
        %v1104 = vlaneseq
        %v1105 = vshrl.u32 %v1104, 7
        %v1106 = vsub.s32 1, %v1105
        %v1107 = vrot.slane %v1098, %v1106
        %v1108 = vlaneseq
        %v1109 = vshrl.u32 %v1108, 7
        %v1110 = vsub.s32 2, %v1109
        %v1111 = vrot.slane %v1098, %v1110
        %v1112 = vlaneseq
        %v1113 = vshrl.u32 %v1112, 7
        %v1114 = vsub.s32 3, %v1113
        %v1115 = vrot.slane %v1098, %v1114
        %v1184 = vunpack.c.l.b16 %v1034
        %v1185 = vunpack.c.h.b16 %v1034
        %v1186 = vunpack.c.l.b16 %v1035
        %v1187 = vunpack.c.h.b16 %v1035
        %v1188 = vunpack.c.l.b16 %v1036
        %v1189 = vunpack.c.h.b16 %v1036
        %v1190 = vunpack.c.l.b16 %v1037
        %v1191 = vunpack.c.h.b16 %v1037
        %v1192 = vunpack.c.l.b16 %v1038
        %v1193 = vunpack.c.h.b16 %v1038
        %v1194 = vunpack.c.l.b16 %v1039
        %v1195 = vunpack.c.h.b16 %v1039
        %v1196 = vunpack.c.l.b16 %v1040
        %v1197 = vunpack.c.h.b16 %v1040
        %v1198 = vunpack.c.l.b16 %v1041
        %v1199 = vunpack.c.h.b16 %v1041
        %v1200 = vunpack.c.l.b16 %v1042
        %v1201 = vunpack.c.h.b16 %v1042
        %v1202 = vunpack.c.l.b16 %v1043
        %v1203 = vunpack.c.h.b16 %v1043
        %v1204 = vunpack.c.l.b16 %v1044
        %v1205 = vunpack.c.h.b16 %v1044
        %v1206 = vunpack.c.l.b16 %v1045
        %v1207 = vunpack.c.h.b16 %v1045
        %v1208 = vunpack.c.l.b16 %v1046
        %v1209 = vunpack.c.h.b16 %v1046
        %v1210 = vunpack.c.l.b16 %v1047
        %v1211 = vunpack.c.h.b16 %v1047
        %v1212 = vunpack.c.l.b16 %v1048
        %v1213 = vunpack.c.h.b16 %v1048
        %v1214 = vunpack.c.l.b16 %v1049
        %v1215 = vunpack.c.h.b16 %v1049
        %v1216 = vunpack.c.l.b16 %v1050
        %v1217 = vunpack.c.h.b16 %v1050
        %v1218 = vunpack.c.l.b16 %v1051
        %v1219 = vunpack.c.h.b16 %v1051
        %v1220 = vunpack.c.l.b16 %v1052
        %v1221 = vunpack.c.h.b16 %v1052
        %v1222 = vunpack.c.l.b16 %v1053
        %v1223 = vunpack.c.h.b16 %v1053
        %v1224 = vunpack.c.l.b16 %v1054
        %v1225 = vunpack.c.h.b16 %v1054
        %v1226 = vunpack.c.l.b16 %v1055
        %v1227 = vunpack.c.h.b16 %v1055
        %v1228 = vunpack.c.l.b16 %v1056
        %v1229 = vunpack.c.h.b16 %v1056
        %v1230 = vunpack.c.l.b16 %v1057
        %v1231 = vunpack.c.h.b16 %v1057
        %v1232 = vunpack.c.l.b16 %v1058
        %v1233 = vunpack.c.h.b16 %v1058
        %v1234 = vunpack.c.l.b16 %v1059
        %v1235 = vunpack.c.h.b16 %v1059
        %v1236 = vunpack.c.l.b16 %v1060
        %v1237 = vunpack.c.h.b16 %v1060
        %v1238 = vunpack.c.l.b16 %v1061
        %v1239 = vunpack.c.h.b16 %v1061
        %v1240 = vunpack.c.l.b16 %v1062
        %v1241 = vunpack.c.h.b16 %v1062
        %v1242 = vunpack.c.l.b16 %v1063
        %v1243 = vunpack.c.h.b16 %v1063
        %v1244 = vunpack.c.l.b16 %v1064
        %v1245 = vunpack.c.h.b16 %v1064
        %v1246 = vunpack.c.l.b16 %v1065
        %v1247 = vunpack.c.h.b16 %v1065
        %v1248 = vunpack.c.l.b16 %v1066
        %v1249 = vunpack.c.h.b16 %v1066
        %v1250 = vunpack.c.l.b16 %v1067
        %v1251 = vunpack.c.h.b16 %v1067
        %v1252 = vunpack.c.l.b16 %v1068
        %v1253 = vunpack.c.h.b16 %v1068
        %v1254 = vunpack.c.l.b16 %v1069
        %v1255 = vunpack.c.h.b16 %v1069
        %v1256 = vunpack.c.l.b16 %v1070
        %v1257 = vunpack.c.h.b16 %v1070
        %v1258 = vunpack.c.l.b16 %v1071
        %v1259 = vunpack.c.h.b16 %v1071
        %v1260 = vunpack.c.l.b16 %v1072
        %v1261 = vunpack.c.h.b16 %v1072
        %v1262 = vunpack.c.l.b16 %v1073
        %v1263 = vunpack.c.h.b16 %v1073
        %v1264 = vunpack.c.l.b16 %v1074
        %v1265 = vunpack.c.h.b16 %v1074
        %v1266 = vunpack.c.l.b16 %v1075
        %v1267 = vunpack.c.h.b16 %v1075
        %v1268 = vunpack.c.l.b16 %v1076
        %v1269 = vunpack.c.h.b16 %v1076
        %v1270 = vunpack.c.l.b16 %v1077
        %v1271 = vunpack.c.h.b16 %v1077
        %v1272 = vunpack.c.l.b16 %v1078
        %v1273 = vunpack.c.h.b16 %v1078
        %v1274 = vunpack.c.l.b16 %v1079
        %v1275 = vunpack.c.h.b16 %v1079
        %v1276 = vunpack.c.l.b16 %v1080
        %v1277 = vunpack.c.h.b16 %v1080
        %v1278 = vunpack.c.l.b16 %v1081
        %v1279 = vunpack.c.h.b16 %v1081
        %v1280 = vunpack.c.l.b16 %v1082
        %v1281 = vunpack.c.h.b16 %v1082
        %v1282 = vunpack.c.l.b16 %v1083
        %v1283 = vunpack.c.h.b16 %v1083
        %v1284 = vunpack.c.l.b16 %v1084
        %v1285 = vunpack.c.h.b16 %v1084
        %v1286 = vunpack.c.l.b16 %v1085
        %v1287 = vunpack.c.h.b16 %v1085
        %v1288 = vunpack.c.l.b16 %v1086
        %v1289 = vunpack.c.h.b16 %v1086
        %v1290 = vunpack.c.l.b16 %v1087
        %v1291 = vunpack.c.h.b16 %v1087
        %v1292 = vunpack.c.l.b16 %v1088
        %v1293 = vunpack.c.h.b16 %v1088
        %v1294 = vunpack.c.l.b16 %v1089
        %v1295 = vunpack.c.h.b16 %v1089
        %v1296 = vunpack.c.l.b16 %v1090
        %v1297 = vunpack.c.h.b16 %v1090
        %v1298 = vunpack.c.l.b16 %v1091
        %v1299 = vunpack.c.h.b16 %v1091
        %v1300 = vunpack.c.l.b16 %v1092
        %v1301 = vunpack.c.h.b16 %v1092
        %v1302 = vunpack.c.l.b16 %v1093
        %v1303 = vunpack.c.h.b16 %v1093
        %v1304 = vunpack.c.l.b16 %v1094
        %v1305 = vunpack.c.h.b16 %v1094
        %v1306 = vunpack.c.l.b16 %v1095
        %v1307 = vunpack.c.h.b16 %v1095
        %v1308 = vunpack.c.l.b16 %v1096
        %v1309 = vunpack.c.h.b16 %v1096
        %v1310 = vunpack.c.l.b16 %v1097
        %v1311 = vunpack.c.h.b16 %v1097
        %v1312 = vpack.c.b16 %v1188, %v1184
        %v1313 = vpack.c.b16 %v1189, %v1185
        %v1314 = vpack.c.b16 %v1190, %v1186
        %v1315 = vpack.c.b16 %v1191, %v1187
        %v1316 = vpack.c.b16 %v1196, %v1192
        %v1317 = vpack.c.b16 %v1197, %v1193
        %v1318 = vpack.c.b16 %v1198, %v1194
        %v1319 = vpack.c.b16 %v1199, %v1195
        %v1320 = vpack.c.b16 %v1204, %v1200
        %v1321 = vpack.c.b16 %v1205, %v1201
        %v1322 = vpack.c.b16 %v1206, %v1202
        %v1323 = vpack.c.b16 %v1207, %v1203
        %v1324 = vpack.c.b16 %v1212, %v1208
        %v1325 = vpack.c.b16 %v1213, %v1209
        %v1326 = vpack.c.b16 %v1214, %v1210
        %v1327 = vpack.c.b16 %v1215, %v1211
        %v1328 = vpack.c.b16 %v1220, %v1216
        %v1329 = vpack.c.b16 %v1221, %v1217
        %v1330 = vpack.c.b16 %v1222, %v1218
        %v1331 = vpack.c.b16 %v1223, %v1219
        %v1332 = vpack.c.b16 %v1228, %v1224
        %v1333 = vpack.c.b16 %v1229, %v1225
        %v1334 = vpack.c.b16 %v1230, %v1226
        %v1335 = vpack.c.b16 %v1231, %v1227
        %v1336 = vpack.c.b16 %v1236, %v1232
        %v1337 = vpack.c.b16 %v1237, %v1233
        %v1338 = vpack.c.b16 %v1238, %v1234
        %v1339 = vpack.c.b16 %v1239, %v1235
        %v1340 = vpack.c.b16 %v1244, %v1240
        %v1341 = vpack.c.b16 %v1245, %v1241
        %v1342 = vpack.c.b16 %v1246, %v1242
        %v1343 = vpack.c.b16 %v1247, %v1243
        %v1344 = vpack.c.b16 %v1252, %v1248
        %v1345 = vpack.c.b16 %v1253, %v1249
        %v1346 = vpack.c.b16 %v1254, %v1250
        %v1347 = vpack.c.b16 %v1255, %v1251
        %v1348 = vpack.c.b16 %v1260, %v1256
        %v1349 = vpack.c.b16 %v1261, %v1257
        %v1350 = vpack.c.b16 %v1262, %v1258
        %v1351 = vpack.c.b16 %v1263, %v1259
        %v1352 = vpack.c.b16 %v1268, %v1264
        %v1353 = vpack.c.b16 %v1269, %v1265
        %v1354 = vpack.c.b16 %v1270, %v1266
        %v1355 = vpack.c.b16 %v1271, %v1267
        %v1356 = vpack.c.b16 %v1276, %v1272
        %v1357 = vpack.c.b16 %v1277, %v1273
        %v1358 = vpack.c.b16 %v1278, %v1274
        %v1359 = vpack.c.b16 %v1279, %v1275
        %v1360 = vpack.c.b16 %v1284, %v1280
        %v1361 = vpack.c.b16 %v1285, %v1281
        %v1362 = vpack.c.b16 %v1286, %v1282
        %v1363 = vpack.c.b16 %v1287, %v1283
        %v1364 = vpack.c.b16 %v1292, %v1288
        %v1365 = vpack.c.b16 %v1293, %v1289
        %v1366 = vpack.c.b16 %v1294, %v1290
        %v1367 = vpack.c.b16 %v1295, %v1291
        %v1368 = vpack.c.b16 %v1300, %v1296
        %v1369 = vpack.c.b16 %v1301, %v1297
        %v1370 = vpack.c.b16 %v1302, %v1298
        %v1371 = vpack.c.b16 %v1303, %v1299
        %v1372 = vpack.c.b16 %v1308, %v1304
        %v1373 = vpack.c.b16 %v1309, %v1305
        %v1374 = vpack.c.b16 %v1310, %v1306
        %v1375 = vpack.c.b16 %v1311, %v1307
        %1440 = vmatprep.subr.bf16.mxu0 %v1313
        %1441 = vmatpush1.bf16.msra.mxu0 %v1312
        %1442 = vmatprep.subr.bf16.mxu0 %v1317
        %1443 = vmatpush1.bf16.msra.mxu0 %v1316
        %1444 = vmatprep.subr.bf16.mxu0 %v1321
        %1445 = vmatpush1.bf16.msra.mxu0 %v1320
        %1446 = vmatprep.subr.bf16.mxu0 %v1325
        %1447 = vmatpush1.bf16.msra.mxu0 %v1324
        %1448 = vmatprep.subr.bf16.mxu0 %v1329
        %1449 = vmatpush1.bf16.msra.mxu0 %v1328
        %1450 = vmatprep.subr.bf16.mxu0 %v1333
        %1451 = vmatpush1.bf16.msra.mxu0 %v1332
        %1452 = vmatprep.subr.bf16.mxu0 %v1337
        %1453 = vmatpush1.bf16.msra.mxu0 %v1336
        %1454 = vmatprep.subr.bf16.mxu0 %v1341
        %1455 = vmatpush1.bf16.msra.mxu0 %v1340
        %1456 = vmatprep.subr.bf16.mxu0 %v1345
        %1457 = vmatpush1.bf16.msra.mxu0 %v1344
        %1458 = vmatprep.subr.bf16.mxu0 %v1349
        %1459 = vmatpush1.bf16.msra.mxu0 %v1348
        %1460 = vmatprep.subr.bf16.mxu0 %v1353
        %1461 = vmatpush1.bf16.msra.mxu0 %v1352
        %1462 = vmatprep.subr.bf16.mxu0 %v1357
        %1463 = vmatpush1.bf16.msra.mxu0 %v1356
        %1464 = vmatprep.subr.bf16.mxu0 %v1361
        %1465 = vmatpush1.bf16.msra.mxu0 %v1360
        %1466 = vmatprep.subr.bf16.mxu0 %v1365
        %1467 = vmatpush1.bf16.msra.mxu0 %v1364
        %1468 = vmatprep.subr.bf16.mxu0 %v1369
        %1469 = vmatpush1.bf16.msra.mxu0 %v1368
        %1470 = vmatprep.subr.bf16.mxu0 %v1373
        %1471 = vmatpush1.bf16.msra.mxu0 %v1372
        %1472 = vmatprep.mubr.bf16.mxu0 %v1019
        %1473 = vmatmul.mubr.bf16.gmra.mrb[0].mxu0 %v1018
        %v1474 = vpop.f32.mrb[0].mxu0
        %v1475 = vadd.f32 %v1103, %v1474
        %v1476 = vpop.f32.mrb[0].mxu0
        %v1477 = vadd.f32 %v1107, %v1476
        %v1478 = vpop.f32.mrb[0].mxu0
        %v1479 = vadd.f32 %v1103, %v1478
        %v1480 = vpop.f32.mrb[0].mxu0
        %v1481 = vadd.f32 %v1107, %v1480
        %1482 = vmatprep.mubr.bf16.mxu0 %v1021
        %1483 = vmatmul.mubr.bf16.gmra.mrb[0].mxu0 %v1020
        %v1484 = vpop.f32.mrb[0].mxu0
        %v1485 = vadd.f32 %v1103, %v1484
        %v1486 = vpop.f32.mrb[0].mxu0
        %v1487 = vadd.f32 %v1107, %v1486
        %v1488 = vpop.f32.mrb[0].mxu0
        %v1489 = vadd.f32 %v1103, %v1488
        %v1490 = vpop.f32.mrb[0].mxu0
        %v1491 = vadd.f32 %v1107, %v1490
        %1492 = vmatprep.mubr.bf16.mxu0 %v1023
        %1493 = vmatmul.mubr.bf16.gmra.mrb[0].mxu0 %v1022
        %v1494 = vpop.f32.mrb[0].mxu0
        %v1495 = vadd.f32 %v1103, %v1494
        %v1496 = vpop.f32.mrb[0].mxu0
        %v1497 = vadd.f32 %v1107, %v1496
        %v1498 = vpop.f32.mrb[0].mxu0
        %v1499 = vadd.f32 %v1103, %v1498
        %v1500 = vpop.f32.mrb[0].mxu0
        %v1501 = vadd.f32 %v1107, %v1500
        %1502 = vmatprep.mubr.bf16.mxu0 %v1025
        %1503 = vmatmul.mubr.bf16.gmra.mrb[0].mxu0 %v1024
        %v1504 = vpop.f32.mrb[0].mxu0
        %v1505 = vadd.f32 %v1103, %v1504
        %v1506 = vpop.f32.mrb[0].mxu0
        %v1507 = vadd.f32 %v1107, %v1506
        %v1508 = vpop.f32.mrb[0].mxu0
        %v1509 = vadd.f32 %v1103, %v1508
        %v1510 = vpop.f32.mrb[0].mxu0
        %v1511 = vadd.f32 %v1107, %v1510
        %1512 = vmatprep.mubr.bf16.mxu0 %v1027
        %1513 = vmatmul.mubr.bf16.gmra.mrb[0].mxu0 %v1026
        %v1514 = vpop.f32.mrb[0].mxu0
        %v1515 = vadd.f32 %v1103, %v1514
        %v1516 = vpop.f32.mrb[0].mxu0
        %v1517 = vadd.f32 %v1107, %v1516
        %v1518 = vpop.f32.mrb[0].mxu0
        %v1519 = vadd.f32 %v1103, %v1518
        %v1520 = vpop.f32.mrb[0].mxu0
        %v1521 = vadd.f32 %v1107, %v1520
        %1522 = vmatprep.mubr.bf16.mxu0 %v1029
        %1523 = vmatmul.mubr.bf16.gmra.mrb[0].mxu0 %v1028
        %v1524 = vpop.f32.mrb[0].mxu0
        %v1525 = vadd.f32 %v1103, %v1524
        %v1526 = vpop.f32.mrb[0].mxu0
        %v1527 = vadd.f32 %v1107, %v1526
        %v1528 = vpop.f32.mrb[0].mxu0
        %v1529 = vadd.f32 %v1103, %v1528
        %v1530 = vpop.f32.mrb[0].mxu0
        %v1531 = vadd.f32 %v1107, %v1530
        %1532 = vmatprep.mubr.bf16.mxu0 %v1031
        %1533 = vmatmul.mubr.bf16.gmra.mrb[0].mxu0 %v1030
        %v1534 = vpop.f32.mrb[0].mxu0
        %v1535 = vadd.f32 %v1103, %v1534
        %v1536 = vpop.f32.mrb[0].mxu0
        %v1537 = vadd.f32 %v1107, %v1536
        %v1538 = vpop.f32.mrb[0].mxu0
        %v1539 = vadd.f32 %v1103, %v1538
        %v1540 = vpop.f32.mrb[0].mxu0
        %v1541 = vadd.f32 %v1107, %v1540
        %1542 = vmatprep.mubr.bf16.mxu0 %v1033
        %1543 = vmatmul.mubr.bf16.gmra.mrb[0].mxu0 %v1032
        %v1544 = vpop.f32.mrb[0].mxu0
        %v1545 = vadd.f32 %v1103, %v1544
        %v1546 = vpop.f32.mrb[0].mxu0
        %v1547 = vadd.f32 %v1107, %v1546
        %v1548 = vpop.f32.mrb[0].mxu0
        %v1549 = vadd.f32 %v1103, %v1548
        %v1550 = vpop.f32.mrb[0].mxu0
        %v1551 = vadd.f32 %v1107, %v1550
        %1552 = vdwg.mxu0
        %1553 = vmatprep.subr.bf16.mxu0 %v1315
        %1554 = vmatpush1.bf16.msra.mxu0 %v1314
        %1555 = vmatprep.subr.bf16.mxu0 %v1319
        %1556 = vmatpush1.bf16.msra.mxu0 %v1318
        %1557 = vmatprep.subr.bf16.mxu0 %v1323
        %1558 = vmatpush1.bf16.msra.mxu0 %v1322
        %1559 = vmatprep.subr.bf16.mxu0 %v1327
        %1560 = vmatpush1.bf16.msra.mxu0 %v1326
        %1561 = vmatprep.subr.bf16.mxu0 %v1331
        %1562 = vmatpush1.bf16.msra.mxu0 %v1330
        %1563 = vmatprep.subr.bf16.mxu0 %v1335
        %1564 = vmatpush1.bf16.msra.mxu0 %v1334
        %1565 = vmatprep.subr.bf16.mxu0 %v1339
        %1566 = vmatpush1.bf16.msra.mxu0 %v1338
        %1567 = vmatprep.subr.bf16.mxu0 %v1343
        %1568 = vmatpush1.bf16.msra.mxu0 %v1342
        %1569 = vmatprep.subr.bf16.mxu0 %v1347
        %1570 = vmatpush1.bf16.msra.mxu0 %v1346
        %1571 = vmatprep.subr.bf16.mxu0 %v1351
        %1572 = vmatpush1.bf16.msra.mxu0 %v1350
        %1573 = vmatprep.subr.bf16.mxu0 %v1355
        %1574 = vmatpush1.bf16.msra.mxu0 %v1354
        %1575 = vmatprep.subr.bf16.mxu0 %v1359
        %1576 = vmatpush1.bf16.msra.mxu0 %v1358
        %1577 = vmatprep.subr.bf16.mxu0 %v1363
        %1578 = vmatpush1.bf16.msra.mxu0 %v1362
        %1579 = vmatprep.subr.bf16.mxu0 %v1367
        %1580 = vmatpush1.bf16.msra.mxu0 %v1366
        %1581 = vmatprep.subr.bf16.mxu0 %v1371
        %1582 = vmatpush1.bf16.msra.mxu0 %v1370
        %1583 = vmatprep.subr.bf16.mxu0 %v1375
        %1584 = vmatpush1.bf16.msra.mxu0 %v1374
        %1585 = vmatprep.mubr.bf16.mxu0 %v1019
        %1586 = vmatmul.mubr.bf16.gmra.mrb[0].mxu0 %v1018
        %v1587 = vpop.f32.mrb[0].mxu0
        %v1588 = vadd.f32 %v1111, %v1587
        %v1589 = vpop.f32.mrb[0].mxu0
        %v1590 = vadd.f32 %v1115, %v1589
        %v1591 = vpop.f32.mrb[0].mxu0
        %v1592 = vadd.f32 %v1111, %v1591
        %v1593 = vpop.f32.mrb[0].mxu0
        %v1594 = vadd.f32 %v1115, %v1593
        %1595 = vmatprep.mubr.bf16.mxu0 %v1021
        %1596 = vmatmul.mubr.bf16.gmra.mrb[0].mxu0 %v1020
        %v1597 = vpop.f32.mrb[0].mxu0
        %v1598 = vadd.f32 %v1111, %v1597
        %v1599 = vpop.f32.mrb[0].mxu0
        %v1600 = vadd.f32 %v1115, %v1599
        %v1601 = vpop.f32.mrb[0].mxu0
        %v1602 = vadd.f32 %v1111, %v1601
        %v1603 = vpop.f32.mrb[0].mxu0
        %v1604 = vadd.f32 %v1115, %v1603
        %1605 = vmatprep.mubr.bf16.mxu0 %v1023
        %1606 = vmatmul.mubr.bf16.gmra.mrb[0].mxu0 %v1022
        %v1607 = vpop.f32.mrb[0].mxu0
        %v1608 = vadd.f32 %v1111, %v1607
        %v1609 = vpop.f32.mrb[0].mxu0
        %v1610 = vadd.f32 %v1115, %v1609
        %v1611 = vpop.f32.mrb[0].mxu0
        %v1612 = vadd.f32 %v1111, %v1611
        %v1613 = vpop.f32.mrb[0].mxu0
        %v1614 = vadd.f32 %v1115, %v1613
        %1615 = vmatprep.mubr.bf16.mxu0 %v1025
        %1616 = vmatmul.mubr.bf16.gmra.mrb[0].mxu0 %v1024
        %v1617 = vpop.f32.mrb[0].mxu0
        %v1618 = vadd.f32 %v1111, %v1617
        %v1619 = vpop.f32.mrb[0].mxu0
        %v1620 = vadd.f32 %v1115, %v1619
        %v1621 = vpop.f32.mrb[0].mxu0
        %v1622 = vadd.f32 %v1111, %v1621
        %v1623 = vpop.f32.mrb[0].mxu0
        %v1624 = vadd.f32 %v1115, %v1623
        %1625 = vmatprep.mubr.bf16.mxu0 %v1027
        %1626 = vmatmul.mubr.bf16.gmra.mrb[0].mxu0 %v1026
        %v1627 = vpop.f32.mrb[0].mxu0
        %v1628 = vadd.f32 %v1111, %v1627
        %v1629 = vpop.f32.mrb[0].mxu0
        %v1630 = vadd.f32 %v1115, %v1629
        %v1631 = vpop.f32.mrb[0].mxu0
        %v1632 = vadd.f32 %v1111, %v1631
        %v1633 = vpop.f32.mrb[0].mxu0
        %v1634 = vadd.f32 %v1115, %v1633
        %1635 = vmatprep.mubr.bf16.mxu0 %v1029
        %1636 = vmatmul.mubr.bf16.gmra.mrb[0].mxu0 %v1028
        %v1637 = vpop.f32.mrb[0].mxu0
        %v1638 = vadd.f32 %v1111, %v1637
        %v1639 = vpop.f32.mrb[0].mxu0
        %v1640 = vadd.f32 %v1115, %v1639
        %v1641 = vpop.f32.mrb[0].mxu0
        %v1642 = vadd.f32 %v1111, %v1641
        %v1643 = vpop.f32.mrb[0].mxu0
        %v1644 = vadd.f32 %v1115, %v1643
        %1645 = vmatprep.mubr.bf16.mxu0 %v1031
        %1646 = vmatmul.mubr.bf16.gmra.mrb[0].mxu0 %v1030
        %v1647 = vpop.f32.mrb[0].mxu0
        %v1648 = vadd.f32 %v1111, %v1647
        %v1649 = vpop.f32.mrb[0].mxu0
        %v1650 = vadd.f32 %v1115, %v1649
        %v1651 = vpop.f32.mrb[0].mxu0
        %v1652 = vadd.f32 %v1111, %v1651
        %v1653 = vpop.f32.mrb[0].mxu0
        %v1654 = vadd.f32 %v1115, %v1653
        %1655 = vmatprep.mubr.bf16.mxu0 %v1033
        %1656 = vmatmul.mubr.bf16.gmra.mrb[0].mxu0 %v1032
        %v1657 = vpop.f32.mrb[0].mxu0
        %v1658 = vadd.f32 %v1111, %v1657
        %v1659 = vpop.f32.mrb[0].mxu0
        %v1660 = vadd.f32 %v1115, %v1659
        %v1661 = vpop.f32.mrb[0].mxu0
        %v1662 = vadd.f32 %v1111, %v1661
        %v1663 = vpop.f32.mrb[0].mxu0
        %v1664 = vadd.f32 %v1115, %v1663
        %1665 = vdwg.mxu0
        %v1666 = vmax.f32 %v1475, 0.0
        %v1667 = vmax.f32 %v1477, 0.0
        %v1668 = vmax.f32 %v1588, 0.0
        %v1669 = vmax.f32 %v1590, 0.0
        %v1670 = vmax.f32 %v1479, 0.0
        %v1671 = vmax.f32 %v1481, 0.0
        %v1672 = vmax.f32 %v1592, 0.0
        %v1673 = vmax.f32 %v1594, 0.0
        %v1674 = vmax.f32 %v1485, 0.0
        %v1675 = vmax.f32 %v1487, 0.0
        %v1676 = vmax.f32 %v1598, 0.0
        %v1677 = vmax.f32 %v1600, 0.0
        %v1678 = vmax.f32 %v1489, 0.0
        %v1679 = vmax.f32 %v1491, 0.0
        %v1680 = vmax.f32 %v1602, 0.0
        %v1681 = vmax.f32 %v1604, 0.0
        %v1682 = vmax.f32 %v1495, 0.0
        %v1683 = vmax.f32 %v1497, 0.0
        %v1684 = vmax.f32 %v1608, 0.0
        %v1685 = vmax.f32 %v1610, 0.0
        %v1686 = vmax.f32 %v1499, 0.0
        %v1687 = vmax.f32 %v1501, 0.0
        %v1688 = vmax.f32 %v1612, 0.0
        %v1689 = vmax.f32 %v1614, 0.0
        %v1690 = vmax.f32 %v1505, 0.0
        %v1691 = vmax.f32 %v1507, 0.0
        %v1692 = vmax.f32 %v1618, 0.0
        %v1693 = vmax.f32 %v1620, 0.0
        %v1694 = vmax.f32 %v1509, 0.0
        %v1695 = vmax.f32 %v1511, 0.0
        %v1696 = vmax.f32 %v1622, 0.0
        %v1697 = vmax.f32 %v1624, 0.0
        %v1698 = vmax.f32 %v1515, 0.0
        %v1699 = vmax.f32 %v1517, 0.0
        %v1700 = vmax.f32 %v1628, 0.0
        %v1701 = vmax.f32 %v1630, 0.0
        %v1702 = vmax.f32 %v1519, 0.0
        %v1703 = vmax.f32 %v1521, 0.0
        %v1704 = vmax.f32 %v1632, 0.0
        %v1705 = vmax.f32 %v1634, 0.0
        %v1706 = vmax.f32 %v1525, 0.0
        %v1707 = vmax.f32 %v1527, 0.0
        %v1708 = vmax.f32 %v1638, 0.0
        %v1709 = vmax.f32 %v1640, 0.0
        %v1710 = vmax.f32 %v1529, 0.0
        %v1711 = vmax.f32 %v1531, 0.0
        %v1712 = vmax.f32 %v1642, 0.0
        %v1713 = vmax.f32 %v1644, 0.0
        %v1714 = vmax.f32 %v1535, 0.0
        %v1715 = vmax.f32 %v1537, 0.0
        %v1716 = vmax.f32 %v1648, 0.0
        %v1717 = vmax.f32 %v1650, 0.0
        %v1718 = vmax.f32 %v1539, 0.0
        %v1719 = vmax.f32 %v1541, 0.0
        %v1720 = vmax.f32 %v1652, 0.0
        %v1721 = vmax.f32 %v1654, 0.0
        %v1722 = vmax.f32 %v1545, 0.0
        %v1723 = vmax.f32 %v1547, 0.0
        %v1724 = vmax.f32 %v1658, 0.0
        %v1725 = vmax.f32 %v1660, 0.0
        %v1726 = vmax.f32 %v1549, 0.0
        %v1727 = vmax.f32 %v1551, 0.0
        %v1728 = vmax.f32 %v1662, 0.0
        %v1729 = vmax.f32 %v1664, 0.0
        %v1730 = vpack.c.bf16 %v1670, %v1666
        %v1731 = vpack.c.bf16 %v1671, %v1667
        %v1732 = vpack.c.bf16 %v1672, %v1668
        %v1733 = vpack.c.bf16 %v1673, %v1669
        %v1734 = vpack.c.bf16 %v1678, %v1674
        %v1735 = vpack.c.bf16 %v1679, %v1675
        %v1736 = vpack.c.bf16 %v1680, %v1676
        %v1737 = vpack.c.bf16 %v1681, %v1677
        %v1738 = vpack.c.bf16 %v1686, %v1682
        %v1739 = vpack.c.bf16 %v1687, %v1683
        %v1740 = vpack.c.bf16 %v1688, %v1684
        %v1741 = vpack.c.bf16 %v1689, %v1685
        %v1742 = vpack.c.bf16 %v1694, %v1690
        %v1743 = vpack.c.bf16 %v1695, %v1691
        %v1744 = vpack.c.bf16 %v1696, %v1692
        %v1745 = vpack.c.bf16 %v1697, %v1693
        %v1746 = vpack.c.bf16 %v1702, %v1698
        %v1747 = vpack.c.bf16 %v1703, %v1699
        %v1748 = vpack.c.bf16 %v1704, %v1700
        %v1749 = vpack.c.bf16 %v1705, %v1701
        %v1750 = vpack.c.bf16 %v1710, %v1706
        %v1751 = vpack.c.bf16 %v1711, %v1707
        %v1752 = vpack.c.bf16 %v1712, %v1708
        %v1753 = vpack.c.bf16 %v1713, %v1709
        %v1754 = vpack.c.bf16 %v1718, %v1714
        %v1755 = vpack.c.bf16 %v1719, %v1715
        %v1756 = vpack.c.bf16 %v1720, %v1716
        %v1757 = vpack.c.bf16 %v1721, %v1717
        %v1758 = vpack.c.bf16 %v1726, %v1722
        %v1759 = vpack.c.bf16 %v1727, %v1723
        %v1760 = vpack.c.bf16 %v1728, %v1724
        %v1761 = vpack.c.bf16 %v1729, %v1725
        %v1762 = vld [vmem:[#allocation10] sm:$0xff]
        %v1763 = vld [vmem:[#allocation10 + $0x8] sm:$0xff]
        %v1764 = vld [vmem:[#allocation10 + $0x10] sm:$0xff]
        %v1765 = vld [vmem:[#allocation10 + $0x18] sm:$0xff]
        %v1766 = vld [vmem:[#allocation10 + $0x20] sm:$0xff]
        %v1767 = vld [vmem:[#allocation10 + $0x28] sm:$0xff]
        %v1768 = vld [vmem:[#allocation10 + $0x30] sm:$0xff]
        %v1769 = vld [vmem:[#allocation10 + $0x38] sm:$0xff]
        %v1770 = vld [vmem:[#allocation10 + $0x40] sm:$0xff]
        %v1771 = vld [vmem:[#allocation10 + $0x48] sm:$0xff]
        %v1772 = vld [vmem:[#allocation10 + $0x50] sm:$0xff]
        %v1773 = vld [vmem:[#allocation10 + $0x58] sm:$0xff]
        %v1774 = vld [vmem:[#allocation10 + $0x60] sm:$0xff]
        %v1775 = vld [vmem:[#allocation10 + $0x68] sm:$0xff]
        %v1776 = vld [vmem:[#allocation10 + $0x70] sm:$0xff]
        %v1777 = vld [vmem:[#allocation10 + $0x78] sm:$0xff]
        %v1778 = vld [vmem:[#allocation10 + $0x80] sm:$0xff]
        %v1779 = vld [vmem:[#allocation10 + $0x88] sm:$0xff]
        %v1780 = vld [vmem:[#allocation10 + $0x90] sm:$0xff]
        %v1781 = vld [vmem:[#allocation10 + $0x98] sm:$0xff]
        %v1782 = vld [vmem:[#allocation10 + $0xa0] sm:$0xff]
        %v1783 = vld [vmem:[#allocation10 + $0xa8] sm:$0xff]
        %v1784 = vld [vmem:[#allocation10 + $0xb0] sm:$0xff]
        %v1785 = vld [vmem:[#allocation10 + $0xb8] sm:$0xff]
        %v1786 = vld [vmem:[#allocation10 + $0xc0] sm:$0xff]
        %v1787 = vld [vmem:[#allocation10 + $0xc8] sm:$0xff]
        %v1788 = vld [vmem:[#allocation10 + $0xd0] sm:$0xff]
        %v1789 = vld [vmem:[#allocation10 + $0xd8] sm:$0xff]
        %v1790 = vld [vmem:[#allocation10 + $0xe0] sm:$0xff]
        %v1791 = vld [vmem:[#allocation10 + $0xe8] sm:$0xff]
        %v1792 = vld [vmem:[#allocation10 + $0xf0] sm:$0xff]
        %v1793 = vld [vmem:[#allocation10 + $0xf8] sm:$0xff]
        %v1794 = vld [vmem:[#allocation10 + $0x100] sm:$0xff]
        %v1795 = vld [vmem:[#allocation10 + $0x108] sm:$0xff]
        %v1796 = vld [vmem:[#allocation10 + $0x110] sm:$0xff]
        %v1797 = vld [vmem:[#allocation10 + $0x118] sm:$0xff]
        %v1798 = vld [vmem:[#allocation10 + $0x120] sm:$0xff]
        %v1799 = vld [vmem:[#allocation10 + $0x128] sm:$0xff]
        %v1800 = vld [vmem:[#allocation10 + $0x130] sm:$0xff]
        %v1801 = vld [vmem:[#allocation10 + $0x138] sm:$0xff]
        %v1802 = vld [vmem:[#allocation10 + $0x140] sm:$0xff]
        %v1803 = vld [vmem:[#allocation10 + $0x148] sm:$0xff]
        %v1804 = vld [vmem:[#allocation10 + $0x150] sm:$0xff]
        %v1805 = vld [vmem:[#allocation10 + $0x158] sm:$0xff]
        %v1806 = vld [vmem:[#allocation10 + $0x160] sm:$0xff]
        %v1807 = vld [vmem:[#allocation10 + $0x168] sm:$0xff]
        %v1808 = vld [vmem:[#allocation10 + $0x170] sm:$0xff]
        %v1809 = vld [vmem:[#allocation10 + $0x178] sm:$0xff]
        %v1810 = vld [vmem:[#allocation10 + $0x180] sm:$0xff]
        %v1811 = vld [vmem:[#allocation10 + $0x188] sm:$0xff]
        %v1812 = vld [vmem:[#allocation10 + $0x190] sm:$0xff]
        %v1813 = vld [vmem:[#allocation10 + $0x198] sm:$0xff]
        %v1814 = vld [vmem:[#allocation10 + $0x1a0] sm:$0xff]
        %v1815 = vld [vmem:[#allocation10 + $0x1a8] sm:$0xff]
        %v1816 = vld [vmem:[#allocation10 + $0x1b0] sm:$0xff]
        %v1817 = vld [vmem:[#allocation10 + $0x1b8] sm:$0xff]
        %v1818 = vld [vmem:[#allocation10 + $0x1c0] sm:$0xff]
        %v1819 = vld [vmem:[#allocation10 + $0x1c8] sm:$0xff]
        %v1820 = vld [vmem:[#allocation10 + $0x1d0] sm:$0xff]
        %v1821 = vld [vmem:[#allocation10 + $0x1d8] sm:$0xff]
        %v1822 = vld [vmem:[#allocation10 + $0x1e0] sm:$0xff]
        %v1823 = vld [vmem:[#allocation10 + $0x1e8] sm:$0xff]
        %v1824 = vld [vmem:[#allocation10 + $0x1f0] sm:$0xff]
        %v1825 = vld [vmem:[#allocation10 + $0x1f8] sm:$0xff]
        %v1826 = vld [vmem:[%s8] sm:$0x3]
        %v1828 = vlaneseq
        %v1829 = vshrl.u32 %v1828, 7
        %v1830 = vsub.s32 0, %v1829
        %v1831 = vrot.slane %v1826, %v1830
        %v1832 = vlaneseq
        %v1833 = vshrl.u32 %v1832, 7
        %v1834 = vsub.s32 1, %v1833
        %v1835 = vrot.slane %v1826, %v1834
        %v1902 = vunpack.c.l.b16 %v1762
        %v1903 = vunpack.c.h.b16 %v1762
        %v1904 = vunpack.c.l.b16 %v1763
        %v1905 = vunpack.c.h.b16 %v1763
        %v1906 = vunpack.c.l.b16 %v1764
        %v1907 = vunpack.c.h.b16 %v1764
        %v1908 = vunpack.c.l.b16 %v1765
        %v1909 = vunpack.c.h.b16 %v1765
        %v1910 = vunpack.c.l.b16 %v1766
        %v1911 = vunpack.c.h.b16 %v1766
        %v1912 = vunpack.c.l.b16 %v1767
        %v1913 = vunpack.c.h.b16 %v1767
        %v1914 = vunpack.c.l.b16 %v1768
        %v1915 = vunpack.c.h.b16 %v1768
        %v1916 = vunpack.c.l.b16 %v1769
        %v1917 = vunpack.c.h.b16 %v1769
        %v1918 = vunpack.c.l.b16 %v1770
        %v1919 = vunpack.c.h.b16 %v1770
        %v1920 = vunpack.c.l.b16 %v1771
        %v1921 = vunpack.c.h.b16 %v1771
        %v1922 = vunpack.c.l.b16 %v1772
        %v1923 = vunpack.c.h.b16 %v1772
        %v1924 = vunpack.c.l.b16 %v1773
        %v1925 = vunpack.c.h.b16 %v1773
        %v1926 = vunpack.c.l.b16 %v1774
        %v1927 = vunpack.c.h.b16 %v1774
        %v1928 = vunpack.c.l.b16 %v1775
        %v1929 = vunpack.c.h.b16 %v1775
        %v1930 = vunpack.c.l.b16 %v1776
        %v1931 = vunpack.c.h.b16 %v1776
        %v1932 = vunpack.c.l.b16 %v1777
        %v1933 = vunpack.c.h.b16 %v1777
        %v1934 = vunpack.c.l.b16 %v1778
        %v1935 = vunpack.c.h.b16 %v1778
        %v1936 = vunpack.c.l.b16 %v1779
        %v1937 = vunpack.c.h.b16 %v1779
        %v1938 = vunpack.c.l.b16 %v1780
        %v1939 = vunpack.c.h.b16 %v1780
        %v1940 = vunpack.c.l.b16 %v1781
        %v1941 = vunpack.c.h.b16 %v1781
        %v1942 = vunpack.c.l.b16 %v1782
        %v1943 = vunpack.c.h.b16 %v1782
        %v1944 = vunpack.c.l.b16 %v1783
        %v1945 = vunpack.c.h.b16 %v1783
        %v1946 = vunpack.c.l.b16 %v1784
        %v1947 = vunpack.c.h.b16 %v1784
        %v1948 = vunpack.c.l.b16 %v1785
        %v1949 = vunpack.c.h.b16 %v1785
        %v1950 = vunpack.c.l.b16 %v1786
        %v1951 = vunpack.c.h.b16 %v1786
        %v1952 = vunpack.c.l.b16 %v1787
        %v1953 = vunpack.c.h.b16 %v1787
        %v1954 = vunpack.c.l.b16 %v1788
        %v1955 = vunpack.c.h.b16 %v1788
        %v1956 = vunpack.c.l.b16 %v1789
        %v1957 = vunpack.c.h.b16 %v1789
        %v1958 = vunpack.c.l.b16 %v1790
        %v1959 = vunpack.c.h.b16 %v1790
        %v1960 = vunpack.c.l.b16 %v1791
        %v1961 = vunpack.c.h.b16 %v1791
        %v1962 = vunpack.c.l.b16 %v1792
        %v1963 = vunpack.c.h.b16 %v1792
        %v1964 = vunpack.c.l.b16 %v1793
        %v1965 = vunpack.c.h.b16 %v1793
        %v1966 = vunpack.c.l.b16 %v1794
        %v1967 = vunpack.c.h.b16 %v1794
        %v1968 = vunpack.c.l.b16 %v1795
        %v1969 = vunpack.c.h.b16 %v1795
        %v1970 = vunpack.c.l.b16 %v1796
        %v1971 = vunpack.c.h.b16 %v1796
        %v1972 = vunpack.c.l.b16 %v1797
        %v1973 = vunpack.c.h.b16 %v1797
        %v1974 = vunpack.c.l.b16 %v1798
        %v1975 = vunpack.c.h.b16 %v1798
        %v1976 = vunpack.c.l.b16 %v1799
        %v1977 = vunpack.c.h.b16 %v1799
        %v1978 = vunpack.c.l.b16 %v1800
        %v1979 = vunpack.c.h.b16 %v1800
        %v1980 = vunpack.c.l.b16 %v1801
        %v1981 = vunpack.c.h.b16 %v1801
        %v1982 = vunpack.c.l.b16 %v1802
        %v1983 = vunpack.c.h.b16 %v1802
        %v1984 = vunpack.c.l.b16 %v1803
        %v1985 = vunpack.c.h.b16 %v1803
        %v1986 = vunpack.c.l.b16 %v1804
        %v1987 = vunpack.c.h.b16 %v1804
        %v1988 = vunpack.c.l.b16 %v1805
        %v1989 = vunpack.c.h.b16 %v1805
        %v1990 = vunpack.c.l.b16 %v1806
        %v1991 = vunpack.c.h.b16 %v1806
        %v1992 = vunpack.c.l.b16 %v1807
        %v1993 = vunpack.c.h.b16 %v1807
        %v1994 = vunpack.c.l.b16 %v1808
        %v1995 = vunpack.c.h.b16 %v1808
        %v1996 = vunpack.c.l.b16 %v1809
        %v1997 = vunpack.c.h.b16 %v1809
        %v1998 = vunpack.c.l.b16 %v1810
        %v1999 = vunpack.c.h.b16 %v1810
        %v2000 = vunpack.c.l.b16 %v1811
        %v2001 = vunpack.c.h.b16 %v1811
        %v2002 = vunpack.c.l.b16 %v1812
        %v2003 = vunpack.c.h.b16 %v1812
        %v2004 = vunpack.c.l.b16 %v1813
        %v2005 = vunpack.c.h.b16 %v1813
        %v2006 = vunpack.c.l.b16 %v1814
        %v2007 = vunpack.c.h.b16 %v1814
        %v2008 = vunpack.c.l.b16 %v1815
        %v2009 = vunpack.c.h.b16 %v1815
        %v2010 = vunpack.c.l.b16 %v1816
        %v2011 = vunpack.c.h.b16 %v1816
        %v2012 = vunpack.c.l.b16 %v1817
        %v2013 = vunpack.c.h.b16 %v1817
        %v2014 = vunpack.c.l.b16 %v1818
        %v2015 = vunpack.c.h.b16 %v1818
        %v2016 = vunpack.c.l.b16 %v1819
        %v2017 = vunpack.c.h.b16 %v1819
        %v2018 = vunpack.c.l.b16 %v1820
        %v2019 = vunpack.c.h.b16 %v1820
        %v2020 = vunpack.c.l.b16 %v1821
        %v2021 = vunpack.c.h.b16 %v1821
        %v2022 = vunpack.c.l.b16 %v1822
        %v2023 = vunpack.c.h.b16 %v1822
        %v2024 = vunpack.c.l.b16 %v1823
        %v2025 = vunpack.c.h.b16 %v1823
        %v2026 = vunpack.c.l.b16 %v1824
        %v2027 = vunpack.c.h.b16 %v1824
        %v2028 = vunpack.c.l.b16 %v1825
        %v2029 = vunpack.c.h.b16 %v1825
        %v2030 = vpack.c.b16 %v1904, %v1902
        %v2031 = vpack.c.b16 %v1905, %v1903
        %v2032 = vpack.c.b16 %v1908, %v1906
        %v2033 = vpack.c.b16 %v1909, %v1907
        %v2034 = vpack.c.b16 %v1912, %v1910
        %v2035 = vpack.c.b16 %v1913, %v1911
        %v2036 = vpack.c.b16 %v1916, %v1914
        %v2037 = vpack.c.b16 %v1917, %v1915
        %v2038 = vpack.c.b16 %v1920, %v1918
        %v2039 = vpack.c.b16 %v1921, %v1919
        %v2040 = vpack.c.b16 %v1924, %v1922
        %v2041 = vpack.c.b16 %v1925, %v1923
        %v2042 = vpack.c.b16 %v1928, %v1926
        %v2043 = vpack.c.b16 %v1929, %v1927
        %v2044 = vpack.c.b16 %v1932, %v1930
        %v2045 = vpack.c.b16 %v1933, %v1931
        %v2046 = vpack.c.b16 %v1936, %v1934
        %v2047 = vpack.c.b16 %v1937, %v1935
        %v2048 = vpack.c.b16 %v1940, %v1938
        %v2049 = vpack.c.b16 %v1941, %v1939
        %v2050 = vpack.c.b16 %v1944, %v1942
        %v2051 = vpack.c.b16 %v1945, %v1943
        %v2052 = vpack.c.b16 %v1948, %v1946
        %v2053 = vpack.c.b16 %v1949, %v1947
        %v2054 = vpack.c.b16 %v1952, %v1950
        %v2055 = vpack.c.b16 %v1953, %v1951
        %v2056 = vpack.c.b16 %v1956, %v1954
        %v2057 = vpack.c.b16 %v1957, %v1955
        %v2058 = vpack.c.b16 %v1960, %v1958
        %v2059 = vpack.c.b16 %v1961, %v1959
        %v2060 = vpack.c.b16 %v1964, %v1962
        %v2061 = vpack.c.b16 %v1965, %v1963
        %v2062 = vpack.c.b16 %v1968, %v1966
        %v2063 = vpack.c.b16 %v1969, %v1967
        %v2064 = vpack.c.b16 %v1972, %v1970
        %v2065 = vpack.c.b16 %v1973, %v1971
        %v2066 = vpack.c.b16 %v1976, %v1974
        %v2067 = vpack.c.b16 %v1977, %v1975
        %v2068 = vpack.c.b16 %v1980, %v1978
        %v2069 = vpack.c.b16 %v1981, %v1979
        %v2070 = vpack.c.b16 %v1984, %v1982
        %v2071 = vpack.c.b16 %v1985, %v1983
        %v2072 = vpack.c.b16 %v1988, %v1986
        %v2073 = vpack.c.b16 %v1989, %v1987
        %v2074 = vpack.c.b16 %v1992, %v1990
        %v2075 = vpack.c.b16 %v1993, %v1991
        %v2076 = vpack.c.b16 %v1996, %v1994
        %v2077 = vpack.c.b16 %v1997, %v1995
        %v2078 = vpack.c.b16 %v2000, %v1998
        %v2079 = vpack.c.b16 %v2001, %v1999
        %v2080 = vpack.c.b16 %v2004, %v2002
        %v2081 = vpack.c.b16 %v2005, %v2003
        %v2082 = vpack.c.b16 %v2008, %v2006
        %v2083 = vpack.c.b16 %v2009, %v2007
        %v2084 = vpack.c.b16 %v2012, %v2010
        %v2085 = vpack.c.b16 %v2013, %v2011
        %v2086 = vpack.c.b16 %v2016, %v2014
        %v2087 = vpack.c.b16 %v2017, %v2015
        %v2088 = vpack.c.b16 %v2020, %v2018
        %v2089 = vpack.c.b16 %v2021, %v2019
        %v2090 = vpack.c.b16 %v2024, %v2022
        %v2091 = vpack.c.b16 %v2025, %v2023
        %v2092 = vpack.c.b16 %v2028, %v2026
        %v2093 = vpack.c.b16 %v2029, %v2027
        %2158 = vmatprep.subr.bf16.mxu0 %v2031
        %2159 = vmatpush1.bf16.msra.mxu0 %v2030
        %2160 = vmatprep.subr.bf16.mxu0 %v2033
        %2161 = vmatpush1.bf16.msra.mxu0 %v2032
        %2162 = vmatprep.subr.bf16.mxu0 %v2035
        %2163 = vmatpush1.bf16.msra.mxu0 %v2034
        %2164 = vmatprep.subr.bf16.mxu0 %v2037
        %2165 = vmatpush1.bf16.msra.mxu0 %v2036
        %2166 = vmatprep.subr.bf16.mxu0 %v2039
        %2167 = vmatpush1.bf16.msra.mxu0 %v2038
        %2168 = vmatprep.subr.bf16.mxu0 %v2041
        %2169 = vmatpush1.bf16.msra.mxu0 %v2040
        %2170 = vmatprep.subr.bf16.mxu0 %v2043
        %2171 = vmatpush1.bf16.msra.mxu0 %v2042
        %2172 = vmatprep.subr.bf16.mxu0 %v2045
        %2173 = vmatpush1.bf16.msra.mxu0 %v2044
        %2174 = vmatprep.subr.bf16.mxu0 %v2047
        %2175 = vmatpush1.bf16.msra.mxu0 %v2046
        %2176 = vmatprep.subr.bf16.mxu0 %v2049
        %2177 = vmatpush1.bf16.msra.mxu0 %v2048
        %2178 = vmatprep.subr.bf16.mxu0 %v2051
        %2179 = vmatpush1.bf16.msra.mxu0 %v2050
        %2180 = vmatprep.subr.bf16.mxu0 %v2053
        %2181 = vmatpush1.bf16.msra.mxu0 %v2052
        %2182 = vmatprep.subr.bf16.mxu0 %v2055
        %2183 = vmatpush1.bf16.msra.mxu0 %v2054
        %2184 = vmatprep.subr.bf16.mxu0 %v2057
        %2185 = vmatpush1.bf16.msra.mxu0 %v2056
        %2186 = vmatprep.subr.bf16.mxu0 %v2059
        %2187 = vmatpush1.bf16.msra.mxu0 %v2058
        %2188 = vmatprep.subr.bf16.mxu0 %v2061
        %2189 = vmatpush1.bf16.msra.mxu0 %v2060
        %2190 = vmatprep.mubr.bf16.mxu0 %v1731
        %2191 = vmatmul.mubr.bf16.gmra.mrb[0].mxu0 %v1730
        %v2192 = vpop.f32.mrb[0].mxu0
        %v2193 = vadd.f32 %v1831, %v2192
        %v2194 = vpop.f32.mrb[0].mxu0
        %v2195 = vadd.f32 %v1835, %v2194
        %v2196 = vpop.f32.mrb[0].mxu0
        %v2197 = vadd.f32 %v1831, %v2196
        %v2198 = vpop.f32.mrb[0].mxu0
        %v2199 = vadd.f32 %v1835, %v2198
        %2200 = vmatprep.mubr.bf16.mxu0 %v1735
        %2201 = vmatmul.mubr.bf16.gmra.mrb[0].mxu0 %v1734
        %v2202 = vpop.f32.mrb[0].mxu0
        %v2203 = vadd.f32 %v1831, %v2202
        %v2204 = vpop.f32.mrb[0].mxu0
        %v2205 = vadd.f32 %v1835, %v2204
        %v2206 = vpop.f32.mrb[0].mxu0
        %v2207 = vadd.f32 %v1831, %v2206
        %v2208 = vpop.f32.mrb[0].mxu0
        %v2209 = vadd.f32 %v1835, %v2208
        %2210 = vmatprep.mubr.bf16.mxu0 %v1739
        %2211 = vmatmul.mubr.bf16.gmra.mrb[0].mxu0 %v1738
        %v2212 = vpop.f32.mrb[0].mxu0
        %v2213 = vadd.f32 %v1831, %v2212
        %v2214 = vpop.f32.mrb[0].mxu0
        %v2215 = vadd.f32 %v1835, %v2214
        %v2216 = vpop.f32.mrb[0].mxu0
        %v2217 = vadd.f32 %v1831, %v2216
        %v2218 = vpop.f32.mrb[0].mxu0
        %v2219 = vadd.f32 %v1835, %v2218
        %2220 = vmatprep.mubr.bf16.mxu0 %v1743
        %2221 = vmatmul.mubr.bf16.gmra.mrb[0].mxu0 %v1742
        %v2222 = vpop.f32.mrb[0].mxu0
        %v2223 = vadd.f32 %v1831, %v2222
        %v2224 = vpop.f32.mrb[0].mxu0
        %v2225 = vadd.f32 %v1835, %v2224
        %v2226 = vpop.f32.mrb[0].mxu0
        %v2227 = vadd.f32 %v1831, %v2226
        %v2228 = vpop.f32.mrb[0].mxu0
        %v2229 = vadd.f32 %v1835, %v2228
        %2230 = vmatprep.mubr.bf16.mxu0 %v1747
        %2231 = vmatmul.mubr.bf16.gmra.mrb[0].mxu0 %v1746
        %v2232 = vpop.f32.mrb[0].mxu0
        %v2233 = vadd.f32 %v1831, %v2232
        %v2234 = vpop.f32.mrb[0].mxu0
        %v2235 = vadd.f32 %v1835, %v2234
        %v2236 = vpop.f32.mrb[0].mxu0
        %v2237 = vadd.f32 %v1831, %v2236
        %v2238 = vpop.f32.mrb[0].mxu0
        %v2239 = vadd.f32 %v1835, %v2238
        %2240 = vmatprep.mubr.bf16.mxu0 %v1751
        %2241 = vmatmul.mubr.bf16.gmra.mrb[0].mxu0 %v1750
        %v2242 = vpop.f32.mrb[0].mxu0
        %v2243 = vadd.f32 %v1831, %v2242
        %v2244 = vpop.f32.mrb[0].mxu0
        %v2245 = vadd.f32 %v1835, %v2244
        %v2246 = vpop.f32.mrb[0].mxu0
        %v2247 = vadd.f32 %v1831, %v2246
        %v2248 = vpop.f32.mrb[0].mxu0
        %v2249 = vadd.f32 %v1835, %v2248
        %2250 = vmatprep.mubr.bf16.mxu0 %v1755
        %2251 = vmatmul.mubr.bf16.gmra.mrb[0].mxu0 %v1754
        %v2252 = vpop.f32.mrb[0].mxu0
        %v2253 = vadd.f32 %v1831, %v2252
        %v2254 = vpop.f32.mrb[0].mxu0
        %v2255 = vadd.f32 %v1835, %v2254
        %v2256 = vpop.f32.mrb[0].mxu0
        %v2257 = vadd.f32 %v1831, %v2256
        %v2258 = vpop.f32.mrb[0].mxu0
        %v2259 = vadd.f32 %v1835, %v2258
        %2260 = vmatprep.mubr.bf16.mxu0 %v1759
        %2261 = vmatmul.mubr.bf16.gmra.mrb[0].mxu0 %v1758
        %v2262 = vpop.f32.mrb[0].mxu0
        %v2263 = vadd.f32 %v1831, %v2262
        %v2264 = vpop.f32.mrb[0].mxu0
        %v2265 = vadd.f32 %v1835, %v2264
        %v2266 = vpop.f32.mrb[0].mxu0
        %v2267 = vadd.f32 %v1831, %v2266
        %v2268 = vpop.f32.mrb[0].mxu0
        %v2269 = vadd.f32 %v1835, %v2268
        %2270 = vdwg.mxu0
        %2271 = vmatprep.subr.bf16.mxu0 %v2063
        %2272 = vmatpush1.bf16.msra.mxu0 %v2062
        %2273 = vmatprep.subr.bf16.mxu0 %v2065
        %2274 = vmatpush1.bf16.msra.mxu0 %v2064
        %2275 = vmatprep.subr.bf16.mxu0 %v2067
        %2276 = vmatpush1.bf16.msra.mxu0 %v2066
        %2277 = vmatprep.subr.bf16.mxu0 %v2069
        %2278 = vmatpush1.bf16.msra.mxu0 %v2068
        %2279 = vmatprep.subr.bf16.mxu0 %v2071
        %2280 = vmatpush1.bf16.msra.mxu0 %v2070
        %2281 = vmatprep.subr.bf16.mxu0 %v2073
        %2282 = vmatpush1.bf16.msra.mxu0 %v2072
        %2283 = vmatprep.subr.bf16.mxu0 %v2075
        %2284 = vmatpush1.bf16.msra.mxu0 %v2074
        %2285 = vmatprep.subr.bf16.mxu0 %v2077
        %2286 = vmatpush1.bf16.msra.mxu0 %v2076
        %2287 = vmatprep.subr.bf16.mxu0 %v2079
        %2288 = vmatpush1.bf16.msra.mxu0 %v2078
        %2289 = vmatprep.subr.bf16.mxu0 %v2081
        %2290 = vmatpush1.bf16.msra.mxu0 %v2080
        %2291 = vmatprep.subr.bf16.mxu0 %v2083
        %2292 = vmatpush1.bf16.msra.mxu0 %v2082
        %2293 = vmatprep.subr.bf16.mxu0 %v2085
        %2294 = vmatpush1.bf16.msra.mxu0 %v2084
        %2295 = vmatprep.subr.bf16.mxu0 %v2087
        %2296 = vmatpush1.bf16.msra.mxu0 %v2086
        %2297 = vmatprep.subr.bf16.mxu0 %v2089
        %2298 = vmatpush1.bf16.msra.mxu0 %v2088
        %2299 = vmatprep.subr.bf16.mxu0 %v2091
        %2300 = vmatpush1.bf16.msra.mxu0 %v2090
        %2301 = vmatprep.subr.bf16.mxu0 %v2093
        %2302 = vmatpush1.bf16.msra.mxu0 %v2092
        %2303 = vmatprep.mubr.bf16.mxu0 %v1733
        %2304 = vmatmul.mubr.bf16.gmra.mrb[0].mxu0 %v1732
        %v2305 = vpop.f32.mrb[0].mxu0
        %v2306 = vadd.f32 %v2193, %v2305
        %v2307 = vpop.f32.mrb[0].mxu0
        %v2308 = vadd.f32 %v2195, %v2307
        %v2309 = vpop.f32.mrb[0].mxu0
        %v2310 = vadd.f32 %v2197, %v2309
        %v2311 = vpop.f32.mrb[0].mxu0
        %v2312 = vadd.f32 %v2199, %v2311
        %2313 = vmatprep.mubr.bf16.mxu0 %v1737
        %2314 = vmatmul.mubr.bf16.gmra.mrb[0].mxu0 %v1736
        %v2315 = vpop.f32.mrb[0].mxu0
        %v2316 = vadd.f32 %v2203, %v2315
        %v2317 = vpop.f32.mrb[0].mxu0
        %v2318 = vadd.f32 %v2205, %v2317
        %v2319 = vpop.f32.mrb[0].mxu0
        %v2320 = vadd.f32 %v2207, %v2319
        %v2321 = vpop.f32.mrb[0].mxu0
        %v2322 = vadd.f32 %v2209, %v2321
        %2323 = vmatprep.mubr.bf16.mxu0 %v1741
        %2324 = vmatmul.mubr.bf16.gmra.mrb[0].mxu0 %v1740
        %v2325 = vpop.f32.mrb[0].mxu0
        %v2326 = vadd.f32 %v2213, %v2325
        %v2327 = vpop.f32.mrb[0].mxu0
        %v2328 = vadd.f32 %v2215, %v2327
        %v2329 = vpop.f32.mrb[0].mxu0
        %v2330 = vadd.f32 %v2217, %v2329
        %v2331 = vpop.f32.mrb[0].mxu0
        %v2332 = vadd.f32 %v2219, %v2331
        %2333 = vmatprep.mubr.bf16.mxu0 %v1745
        %2334 = vmatmul.mubr.bf16.gmra.mrb[0].mxu0 %v1744
        %v2335 = vpop.f32.mrb[0].mxu0
        %v2336 = vadd.f32 %v2223, %v2335
        %v2337 = vpop.f32.mrb[0].mxu0
        %v2338 = vadd.f32 %v2225, %v2337
        %v2339 = vpop.f32.mrb[0].mxu0
        %v2340 = vadd.f32 %v2227, %v2339
        %v2341 = vpop.f32.mrb[0].mxu0
        %v2342 = vadd.f32 %v2229, %v2341
        %2343 = vmatprep.mubr.bf16.mxu0 %v1749
        %2344 = vmatmul.mubr.bf16.gmra.mrb[0].mxu0 %v1748
        %v2345 = vpop.f32.mrb[0].mxu0
        %v2346 = vadd.f32 %v2233, %v2345
        %v2347 = vpop.f32.mrb[0].mxu0
        %v2348 = vadd.f32 %v2235, %v2347
        %v2349 = vpop.f32.mrb[0].mxu0
        %v2350 = vadd.f32 %v2237, %v2349
        %v2351 = vpop.f32.mrb[0].mxu0
        %v2352 = vadd.f32 %v2239, %v2351
        %2353 = vmatprep.mubr.bf16.mxu0 %v1753
        %2354 = vmatmul.mubr.bf16.gmra.mrb[0].mxu0 %v1752
        %v2355 = vpop.f32.mrb[0].mxu0
        %v2356 = vadd.f32 %v2243, %v2355
        %v2357 = vpop.f32.mrb[0].mxu0
        %v2358 = vadd.f32 %v2245, %v2357
        %v2359 = vpop.f32.mrb[0].mxu0
        %v2360 = vadd.f32 %v2247, %v2359
        %v2361 = vpop.f32.mrb[0].mxu0
        %v2362 = vadd.f32 %v2249, %v2361
        %2363 = vmatprep.mubr.bf16.mxu0 %v1757
        %2364 = vmatmul.mubr.bf16.gmra.mrb[0].mxu0 %v1756
        %v2365 = vpop.f32.mrb[0].mxu0
        %v2366 = vadd.f32 %v2253, %v2365
        %v2367 = vpop.f32.mrb[0].mxu0
        %v2368 = vadd.f32 %v2255, %v2367
        %v2369 = vpop.f32.mrb[0].mxu0
        %v2370 = vadd.f32 %v2257, %v2369
        %v2371 = vpop.f32.mrb[0].mxu0
        %v2372 = vadd.f32 %v2259, %v2371
        %2373 = vmatprep.mubr.bf16.mxu0 %v1761
        %2374 = vmatmul.mubr.bf16.gmra.mrb[0].mxu0 %v1760
        %v2375 = vpop.f32.mrb[0].mxu0
        %v2376 = vadd.f32 %v2263, %v2375
        %v2377 = vpop.f32.mrb[0].mxu0
        %v2378 = vadd.f32 %v2265, %v2377
        %v2379 = vpop.f32.mrb[0].mxu0
        %v2380 = vadd.f32 %v2267, %v2379
        %v2381 = vpop.f32.mrb[0].mxu0
        %v2382 = vadd.f32 %v2269, %v2381
        %2383 = vdwg.mxu0
        %v2384 = vmax.f32 %v2306, 0.0
        %v2385 = vmax.f32 %v2308, 0.0
        %v2386 = vmax.f32 %v2310, 0.0
        %v2387 = vmax.f32 %v2312, 0.0
        %v2388 = vmax.f32 %v2316, 0.0
        %v2389 = vmax.f32 %v2318, 0.0
        %v2390 = vmax.f32 %v2320, 0.0
        %v2391 = vmax.f32 %v2322, 0.0
        %v2392 = vmax.f32 %v2326, 0.0
        %v2393 = vmax.f32 %v2328, 0.0
        %v2394 = vmax.f32 %v2330, 0.0
        %v2395 = vmax.f32 %v2332, 0.0
        %v2396 = vmax.f32 %v2336, 0.0
        %v2397 = vmax.f32 %v2338, 0.0
        %v2398 = vmax.f32 %v2340, 0.0
        %v2399 = vmax.f32 %v2342, 0.0
        %v2400 = vmax.f32 %v2346, 0.0
        %v2401 = vmax.f32 %v2348, 0.0
        %v2402 = vmax.f32 %v2350, 0.0
        %v2403 = vmax.f32 %v2352, 0.0
        %v2404 = vmax.f32 %v2356, 0.0
        %v2405 = vmax.f32 %v2358, 0.0
        %v2406 = vmax.f32 %v2360, 0.0
        %v2407 = vmax.f32 %v2362, 0.0
        %v2408 = vmax.f32 %v2366, 0.0
        %v2409 = vmax.f32 %v2368, 0.0
        %v2410 = vmax.f32 %v2370, 0.0
        %v2411 = vmax.f32 %v2372, 0.0
        %v2412 = vmax.f32 %v2376, 0.0
        %v2413 = vmax.f32 %v2378, 0.0
        %v2414 = vmax.f32 %v2380, 0.0
        %v2415 = vmax.f32 %v2382, 0.0
        %v2416 = vpack.c.bf16 %v2386, %v2384
        %v2417 = vpack.c.bf16 %v2387, %v2385
        %v2418 = vpack.c.bf16 %v2390, %v2388
        %v2419 = vpack.c.bf16 %v2391, %v2389
        %v2420 = vpack.c.bf16 %v2394, %v2392
        %v2421 = vpack.c.bf16 %v2395, %v2393
        %v2422 = vpack.c.bf16 %v2398, %v2396
        %v2423 = vpack.c.bf16 %v2399, %v2397
        %v2424 = vpack.c.bf16 %v2402, %v2400
        %v2425 = vpack.c.bf16 %v2403, %v2401
        %v2426 = vpack.c.bf16 %v2406, %v2404
        %v2427 = vpack.c.bf16 %v2407, %v2405
        %v2428 = vpack.c.bf16 %v2410, %v2408
        %v2429 = vpack.c.bf16 %v2411, %v2409
        %v2430 = vpack.c.bf16 %v2414, %v2412
        %v2431 = vpack.c.bf16 %v2415, %v2413
        %v2432 = vld [vmem:[#allocation11] sm:$0xf]
        %v2433 = vld [vmem:[#allocation11 + $0x4] sm:$0xf]
        %v2434 = vld [vmem:[#allocation11 + $0x8] sm:$0xf]
        %v2435 = vld [vmem:[#allocation11 + $0xc] sm:$0xf]
        %v2436 = vld [vmem:[#allocation11 + $0x10] sm:$0xf]
        %v2437 = vld [vmem:[#allocation11 + $0x14] sm:$0xf]
        %v2438 = vld [vmem:[#allocation11 + $0x18] sm:$0xf]
        %v2439 = vld [vmem:[#allocation11 + $0x1c] sm:$0xf]
        %v2440 = vld [vmem:[#allocation11 + $0x20] sm:$0xf]
        %v2441 = vld [vmem:[#allocation11 + $0x24] sm:$0xf]
        %v2442 = vld [vmem:[#allocation11 + $0x28] sm:$0xf]
        %v2443 = vld [vmem:[#allocation11 + $0x2c] sm:$0xf]
        %v2444 = vld [vmem:[#allocation11 + $0x30] sm:$0xf]
        %v2445 = vld [vmem:[#allocation11 + $0x34] sm:$0xf]
        %v2446 = vld [vmem:[#allocation11 + $0x38] sm:$0xf]
        %v2447 = vld [vmem:[#allocation11 + $0x3c] sm:$0xf]
        %v2448 = vld [vmem:[#allocation11 + $0x40] sm:$0xf]
        %v2449 = vld [vmem:[#allocation11 + $0x44] sm:$0xf]
        %v2450 = vld [vmem:[#allocation11 + $0x48] sm:$0xf]
        %v2451 = vld [vmem:[#allocation11 + $0x4c] sm:$0xf]
        %v2452 = vld [vmem:[#allocation11 + $0x50] sm:$0xf]
        %v2453 = vld [vmem:[#allocation11 + $0x54] sm:$0xf]
        %v2454 = vld [vmem:[#allocation11 + $0x58] sm:$0xf]
        %v2455 = vld [vmem:[#allocation11 + $0x5c] sm:$0xf]
        %v2456 = vld [vmem:[#allocation11 + $0x60] sm:$0xf]
        %v2457 = vld [vmem:[#allocation11 + $0x64] sm:$0xf]
        %v2458 = vld [vmem:[#allocation11 + $0x68] sm:$0xf]
        %v2459 = vld [vmem:[#allocation11 + $0x6c] sm:$0xf]
        %v2460 = vld [vmem:[#allocation11 + $0x70] sm:$0xf]
        %v2461 = vld [vmem:[#allocation11 + $0x74] sm:$0xf]
        %v2462 = vld [vmem:[#allocation11 + $0x78] sm:$0xf]
        %v2463 = vld [vmem:[#allocation11 + $0x7c] sm:$0xf]
        %v2464 = vld [vmem:[%s10] sm:$0x1]
        %v2466 = vlaneseq
        %v2467 = vshrl.u32 %v2466, 7
        %v2468 = vsub.s32 0, %v2467
        %v2469 = vrot.slane %v2464, %v2468
        %v2503 = vunpack.c.l.b16 %v2432
        %v2504 = vunpack.c.l.b16 %v2433
        %v2505 = vunpack.c.l.b16 %v2434
        %v2506 = vunpack.c.l.b16 %v2435
        %v2507 = vunpack.c.l.b16 %v2436
        %v2508 = vunpack.c.l.b16 %v2437
        %v2509 = vunpack.c.l.b16 %v2438
        %v2510 = vunpack.c.l.b16 %v2439
        %v2511 = vunpack.c.l.b16 %v2440
        %v2512 = vunpack.c.l.b16 %v2441
        %v2513 = vunpack.c.l.b16 %v2442
        %v2514 = vunpack.c.l.b16 %v2443
        %v2515 = vunpack.c.l.b16 %v2444
        %v2516 = vunpack.c.l.b16 %v2445
        %v2517 = vunpack.c.l.b16 %v2446
        %v2518 = vunpack.c.l.b16 %v2447
        %v2519 = vunpack.c.l.b16 %v2448
        %v2520 = vunpack.c.l.b16 %v2449
        %v2521 = vunpack.c.l.b16 %v2450
        %v2522 = vunpack.c.l.b16 %v2451
        %v2523 = vunpack.c.l.b16 %v2452
        %v2524 = vunpack.c.l.b16 %v2453
        %v2525 = vunpack.c.l.b16 %v2454
        %v2526 = vunpack.c.l.b16 %v2455
        %v2527 = vunpack.c.l.b16 %v2456
        %v2528 = vunpack.c.l.b16 %v2457
        %v2529 = vunpack.c.l.b16 %v2458
        %v2530 = vunpack.c.l.b16 %v2459
        %v2531 = vunpack.c.l.b16 %v2460
        %v2532 = vunpack.c.l.b16 %v2461
        %v2533 = vunpack.c.l.b16 %v2462
        %v2534 = vunpack.c.l.b16 %v2463
        %v2535 = vpack.c.b16 %v2504, %v2503
        %v2536 = vpack.c.b16 %v2506, %v2505
        %v2537 = vpack.c.b16 %v2508, %v2507
        %v2538 = vpack.c.b16 %v2510, %v2509
        %v2539 = vpack.c.b16 %v2512, %v2511
        %v2540 = vpack.c.b16 %v2514, %v2513
        %v2541 = vpack.c.b16 %v2516, %v2515
        %v2542 = vpack.c.b16 %v2518, %v2517
        %v2543 = vpack.c.b16 %v2520, %v2519
        %v2544 = vpack.c.b16 %v2522, %v2521
        %v2545 = vpack.c.b16 %v2524, %v2523
        %v2546 = vpack.c.b16 %v2526, %v2525
        %v2547 = vpack.c.b16 %v2528, %v2527
        %v2548 = vpack.c.b16 %v2530, %v2529
        %v2549 = vpack.c.b16 %v2532, %v2531
        %v2550 = vpack.c.b16 %v2534, %v2533
        %2567 = vmatprep.subr.bf16.mxu0 0
        %2568 = vmatpush1.bf16.msra.mxu0 %v2535
        %2569 = vmatprep.subr.bf16.mxu0 0
        %2570 = vmatpush1.bf16.msra.mxu0 %v2536
        %2571 = vmatprep.subr.bf16.mxu0 0
        %2572 = vmatpush1.bf16.msra.mxu0 %v2537
        %2573 = vmatprep.subr.bf16.mxu0 0
        %2574 = vmatpush1.bf16.msra.mxu0 %v2538
        %2575 = vmatprep.subr.bf16.mxu0 0
        %2576 = vmatpush1.bf16.msra.mxu0 %v2539
        %2577 = vmatprep.subr.bf16.mxu0 0
        %2578 = vmatpush1.bf16.msra.mxu0 %v2540
        %2579 = vmatprep.subr.bf16.mxu0 0
        %2580 = vmatpush1.bf16.msra.mxu0 %v2541
        %2581 = vmatprep.subr.bf16.mxu0 0
        %2582 = vmatpush1.bf16.msra.mxu0 %v2542
        %2583 = vmatprep.subr.bf16.mxu0 0
        %2584 = vmatpush1.bf16.msra.mxu0 %v2543
        %2585 = vmatprep.subr.bf16.mxu0 0
        %2586 = vmatpush1.bf16.msra.mxu0 %v2544
        %2587 = vmatprep.subr.bf16.mxu0 0
        %2588 = vmatpush1.bf16.msra.mxu0 %v2545
        %2589 = vmatprep.subr.bf16.mxu0 0
        %2590 = vmatpush1.bf16.msra.mxu0 %v2546
        %2591 = vmatprep.subr.bf16.mxu0 0
        %2592 = vmatpush1.bf16.msra.mxu0 %v2547
        %2593 = vmatprep.subr.bf16.mxu0 0
        %2594 = vmatpush1.bf16.msra.mxu0 %v2548
        %2595 = vmatprep.subr.bf16.mxu0 0
        %2596 = vmatpush1.bf16.msra.mxu0 %v2549
        %2597 = vmatprep.subr.bf16.mxu0 0
        %2598 = vmatpush1.bf16.msra.mxu0 %v2550
        %2599 = vmatprep.mubr.bf16.mxu0 %v2417
        %2600 = vmatmul.mubr.bf16.gmra.mrb[0].mxu0 %v2416
        %v2601 = vpop.f32.mrb[0].mxu0
        %v2602 = vadd.f32 %v2469, %v2601
        %v2603 = vpop.f32.mrb[0].mxu0
        %v2604 = vpop.f32.mrb[0].mxu0
        %v2605 = vadd.f32 %v2469, %v2604
        %v2606 = vpop.f32.mrb[0].mxu0
        %2607 = vmatprep.mubr.bf16.mxu0 %v2419
        %2608 = vmatmul.mubr.bf16.gmra.mrb[0].mxu0 %v2418
        %v2609 = vpop.f32.mrb[0].mxu0
        %v2610 = vadd.f32 %v2469, %v2609
        %v2611 = vpop.f32.mrb[0].mxu0
        %v2612 = vpop.f32.mrb[0].mxu0
        %v2613 = vadd.f32 %v2469, %v2612
        %v2614 = vpop.f32.mrb[0].mxu0
        %2615 = vmatprep.mubr.bf16.mxu0 %v2421
        %2616 = vmatmul.mubr.bf16.gmra.mrb[0].mxu0 %v2420
        %v2617 = vpop.f32.mrb[0].mxu0
        %v2618 = vadd.f32 %v2469, %v2617
        %v2619 = vpop.f32.mrb[0].mxu0
        %v2620 = vpop.f32.mrb[0].mxu0
        %v2621 = vadd.f32 %v2469, %v2620
        %v2622 = vpop.f32.mrb[0].mxu0
        %2623 = vmatprep.mubr.bf16.mxu0 %v2423
        %2624 = vmatmul.mubr.bf16.gmra.mrb[0].mxu0 %v2422
        %v2625 = vpop.f32.mrb[0].mxu0
        %v2626 = vadd.f32 %v2469, %v2625
        %v2627 = vpop.f32.mrb[0].mxu0
        %v2628 = vpop.f32.mrb[0].mxu0
        %v2629 = vadd.f32 %v2469, %v2628
        %v2630 = vpop.f32.mrb[0].mxu0
        %2631 = vmatprep.mubr.bf16.mxu0 %v2425
        %2632 = vmatmul.mubr.bf16.gmra.mrb[0].mxu0 %v2424
        %v2633 = vpop.f32.mrb[0].mxu0
        %v2634 = vadd.f32 %v2469, %v2633
        %v2635 = vpop.f32.mrb[0].mxu0
        %v2636 = vpop.f32.mrb[0].mxu0
        %v2637 = vadd.f32 %v2469, %v2636
        %v2638 = vpop.f32.mrb[0].mxu0
        %2639 = vmatprep.mubr.bf16.mxu0 %v2427
        %2640 = vmatmul.mubr.bf16.gmra.mrb[0].mxu0 %v2426
        %v2641 = vpop.f32.mrb[0].mxu0
        %v2642 = vadd.f32 %v2469, %v2641
        %v2643 = vpop.f32.mrb[0].mxu0
        %v2644 = vpop.f32.mrb[0].mxu0
        %v2645 = vadd.f32 %v2469, %v2644
        %v2646 = vpop.f32.mrb[0].mxu0
        %2647 = vmatprep.mubr.bf16.mxu0 %v2429
        %2648 = vmatmul.mubr.bf16.gmra.mrb[0].mxu0 %v2428
        %v2649 = vpop.f32.mrb[0].mxu0
        %v2650 = vadd.f32 %v2469, %v2649
        %v2651 = vpop.f32.mrb[0].mxu0
        %v2652 = vpop.f32.mrb[0].mxu0
        %v2653 = vadd.f32 %v2469, %v2652
        %v2654 = vpop.f32.mrb[0].mxu0
        %2655 = vmatprep.mubr.bf16.mxu0 %v2431
        %2656 = vmatmul.mubr.bf16.gmra.mrb[0].mxu0 %v2430
        %v2657 = vpop.f32.mrb[0].mxu0
        %v2658 = vadd.f32 %v2469, %v2657
        %v2659 = vpop.f32.mrb[0].mxu0
        %v2660 = vpop.f32.mrb[0].mxu0
        %v2661 = vadd.f32 %v2469, %v2660
        %v2662 = vpop.f32.mrb[0].mxu0
        %2663 = vdwg.mxu0
        %v2664 = vmax.f32 %v2602, 0.0
        %v2665 = vmax.f32 %v2605, 0.0
        %v2666 = vmax.f32 %v2610, 0.0
        %v2667 = vmax.f32 %v2613, 0.0
        %v2668 = vmax.f32 %v2618, 0.0
        %v2669 = vmax.f32 %v2621, 0.0
        %v2670 = vmax.f32 %v2626, 0.0
        %v2671 = vmax.f32 %v2629, 0.0
        %v2672 = vmax.f32 %v2634, 0.0
        %v2673 = vmax.f32 %v2637, 0.0
        %v2674 = vmax.f32 %v2642, 0.0
        %v2675 = vmax.f32 %v2645, 0.0
        %v2676 = vmax.f32 %v2650, 0.0
        %v2677 = vmax.f32 %v2653, 0.0
        %v2678 = vmax.f32 %v2658, 0.0
        %v2679 = vmax.f32 %v2661, 0.0
        %v2680 = vpack.c.bf16 %v2665, %v2664
        %v2681 = vpack.c.bf16 %v2667, %v2666
        %v2682 = vpack.c.bf16 %v2669, %v2668
        %v2683 = vpack.c.bf16 %v2671, %v2670
        %v2684 = vpack.c.bf16 %v2673, %v2672
        %v2685 = vpack.c.bf16 %v2675, %v2674
        %v2686 = vpack.c.bf16 %v2677, %v2676
        %v2687 = vpack.c.bf16 %v2679, %v2678
        %v2688 = vld [vmem:[#allocation13] sm:$0xf]
        %v2689 = vld [vmem:[#allocation13 + $0x4] sm:$0xf]
        %v2690 = vld [vmem:[#allocation13 + $0x8] sm:$0xf]
        %v2691 = vld [vmem:[#allocation13 + $0xc] sm:$0xf]
        %v2692 = vld [vmem:[#allocation13 + $0x10] sm:$0xf]
        %v2693 = vld [vmem:[#allocation13 + $0x14] sm:$0xf]
        %v2694 = vld [vmem:[#allocation13 + $0x18] sm:$0xf]
        %v2695 = vld [vmem:[#allocation13 + $0x1c] sm:$0xf]
        %v2696 = vld [vmem:[#allocation13 + $0x20] sm:$0xf]
        %v2697 = vld [vmem:[#allocation13 + $0x24] sm:$0xf]
        %v2698 = vld [vmem:[#allocation13 + $0x28] sm:$0xf]
        %v2699 = vld [vmem:[#allocation13 + $0x2c] sm:$0xf]
        %v2700 = vld [vmem:[#allocation13 + $0x30] sm:$0xf]
        %v2701 = vld [vmem:[#allocation13 + $0x34] sm:$0xf]
        %v2702 = vld [vmem:[#allocation13 + $0x38] sm:$0xf]
        %v2703 = vld [vmem:[#allocation13 + $0x3c] sm:$0xf]
        %v2704 = vld [vmem:[%s12] sm:$0x1]
        %v2706 = vlaneseq
        %v2707 = vshrl.u32 %v2706, 7
        %v2708 = vsub.s32 0, %v2707
        %v2709 = vrot.slane %v2704, %v2708
        %v2727 = vunpack.c.l.b16 %v2688
        %v2728 = vunpack.c.l.b16 %v2689
        %v2729 = vunpack.c.l.b16 %v2690
        %v2730 = vunpack.c.l.b16 %v2691
        %v2731 = vunpack.c.l.b16 %v2692
        %v2732 = vunpack.c.l.b16 %v2693
        %v2733 = vunpack.c.l.b16 %v2694
        %v2734 = vunpack.c.l.b16 %v2695
        %v2735 = vunpack.c.l.b16 %v2696
        %v2736 = vunpack.c.l.b16 %v2697
        %v2737 = vunpack.c.l.b16 %v2698
        %v2738 = vunpack.c.l.b16 %v2699
        %v2739 = vunpack.c.l.b16 %v2700
        %v2740 = vunpack.c.l.b16 %v2701
        %v2741 = vunpack.c.l.b16 %v2702
        %v2742 = vunpack.c.l.b16 %v2703
        %v2743 = vpack.c.b16 %v2728, %v2727
        %v2744 = vpack.c.b16 %v2730, %v2729
        %v2745 = vpack.c.b16 %v2732, %v2731
        %v2746 = vpack.c.b16 %v2734, %v2733
        %v2747 = vpack.c.b16 %v2736, %v2735
        %v2748 = vpack.c.b16 %v2738, %v2737
        %v2749 = vpack.c.b16 %v2740, %v2739
        %v2750 = vpack.c.b16 %v2742, %v2741
        %2759 = vmatprep.subr.bf16.mxu0 0
        %2760 = vmatpush1.bf16.msra.mxu0 %v2743
        %2761 = vmatprep.subr.bf16.mxu0 0
        %2762 = vmatpush1.bf16.msra.mxu0 %v2744
        %2763 = vmatprep.subr.bf16.mxu0 0
        %2764 = vmatpush1.bf16.msra.mxu0 %v2745
        %2765 = vmatprep.subr.bf16.mxu0 0
        %2766 = vmatpush1.bf16.msra.mxu0 %v2746
        %2767 = vmatprep.subr.bf16.mxu0 0
        %2768 = vmatpush1.bf16.msra.mxu0 %v2747
        %2769 = vmatprep.subr.bf16.mxu0 0
        %2770 = vmatpush1.bf16.msra.mxu0 %v2748
        %2771 = vmatprep.subr.bf16.mxu0 0
        %2772 = vmatpush1.bf16.msra.mxu0 %v2749
        %2773 = vmatprep.subr.bf16.mxu0 0
        %2774 = vmatpush1.bf16.msra.mxu0 %v2750
        %2775 = vmatprep.subr.bf16.mxu0 0
        %2776 = vmatpush1.bf16.msra.mxu0 0
        %2777 = vmatprep.subr.bf16.mxu0 0
        %2778 = vmatpush1.bf16.msra.mxu0 0
        %2779 = vmatprep.subr.bf16.mxu0 0
        %2780 = vmatpush1.bf16.msra.mxu0 0
        %2781 = vmatprep.subr.bf16.mxu0 0
        %2782 = vmatpush1.bf16.msra.mxu0 0
        %2783 = vmatprep.subr.bf16.mxu0 0
        %2784 = vmatpush1.bf16.msra.mxu0 0
        %2785 = vmatprep.subr.bf16.mxu0 0
        %2786 = vmatpush1.bf16.msra.mxu0 0
        %2787 = vmatprep.subr.bf16.mxu0 0
        %2788 = vmatpush1.bf16.msra.mxu0 0
        %2789 = vmatprep.subr.bf16.mxu0 0
        %2790 = vmatpush1.bf16.msra.mxu0 0
        %2791 = vmatprep.mubr.bf16.mxu0 0
        %2792 = vmatmul.mubr.bf16.gmra.mrb[0].mxu0 %v2680
        %v2793 = vpop.f32.mrb[0].mxu0
        %v2794 = vadd.f32 %v2709, %v2793
        %v2795 = vpop.f32.mrb[0].mxu0
        %v2796 = vpop.f32.mrb[0].mxu0
        %v2797 = vadd.f32 %v2709, %v2796
        %v2798 = vpop.f32.mrb[0].mxu0
        %2799 = vmatprep.mubr.bf16.mxu0 0
        %2800 = vmatmul.mubr.bf16.gmra.mrb[0].mxu0 %v2681
        %v2801 = vpop.f32.mrb[0].mxu0
        %v2802 = vadd.f32 %v2709, %v2801
        %v2803 = vpop.f32.mrb[0].mxu0
        %v2804 = vpop.f32.mrb[0].mxu0
        %v2805 = vadd.f32 %v2709, %v2804
        %v2806 = vpop.f32.mrb[0].mxu0
        %2807 = vmatprep.mubr.bf16.mxu0 0
        %2808 = vmatmul.mubr.bf16.gmra.mrb[0].mxu0 %v2682
        %v2809 = vpop.f32.mrb[0].mxu0
        %v2810 = vadd.f32 %v2709, %v2809
        %v2811 = vpop.f32.mrb[0].mxu0
        %v2812 = vpop.f32.mrb[0].mxu0
        %v2813 = vadd.f32 %v2709, %v2812
        %v2814 = vpop.f32.mrb[0].mxu0
        %2815 = vmatprep.mubr.bf16.mxu0 0
        %2816 = vmatmul.mubr.bf16.gmra.mrb[0].mxu0 %v2683
        %v2817 = vpop.f32.mrb[0].mxu0
        %v2818 = vadd.f32 %v2709, %v2817
        %v2819 = vpop.f32.mrb[0].mxu0
        %v2820 = vpop.f32.mrb[0].mxu0
        %v2821 = vadd.f32 %v2709, %v2820
        %v2822 = vpop.f32.mrb[0].mxu0
        %2823 = vmatprep.mubr.bf16.mxu0 0
        %2824 = vmatmul.mubr.bf16.gmra.mrb[0].mxu0 %v2684
        %v2825 = vpop.f32.mrb[0].mxu0
        %v2826 = vadd.f32 %v2709, %v2825
        %v2827 = vpop.f32.mrb[0].mxu0
        %v2828 = vpop.f32.mrb[0].mxu0
        %v2829 = vadd.f32 %v2709, %v2828
        %v2830 = vpop.f32.mrb[0].mxu0
        %2831 = vmatprep.mubr.bf16.mxu0 0
        %2832 = vmatmul.mubr.bf16.gmra.mrb[0].mxu0 %v2685
        %v2833 = vpop.f32.mrb[0].mxu0
        %v2834 = vadd.f32 %v2709, %v2833
        %v2835 = vpop.f32.mrb[0].mxu0
        %v2836 = vpop.f32.mrb[0].mxu0
        %v2837 = vadd.f32 %v2709, %v2836
        %v2838 = vpop.f32.mrb[0].mxu0
        %2839 = vmatprep.mubr.bf16.mxu0 0
        %2840 = vmatmul.mubr.bf16.gmra.mrb[0].mxu0 %v2686
        %v2841 = vpop.f32.mrb[0].mxu0
        %v2842 = vadd.f32 %v2709, %v2841
        %v2843 = vpop.f32.mrb[0].mxu0
        %v2844 = vpop.f32.mrb[0].mxu0
        %v2845 = vadd.f32 %v2709, %v2844
        %v2846 = vpop.f32.mrb[0].mxu0
        %2847 = vmatprep.mubr.bf16.mxu0 0
        %2848 = vmatmul.mubr.bf16.gmra.mrb[0].mxu0 %v2687
        %v2849 = vpop.f32.mrb[0].mxu0
        %v2850 = vadd.f32 %v2709, %v2849
        %v2851 = vpop.f32.mrb[0].mxu0
        %v2852 = vpop.f32.mrb[0].mxu0
        %v2853 = vadd.f32 %v2709, %v2852
        %v2854 = vpop.f32.mrb[0].mxu0
        %2855 = vdwg.mxu0
        %2856 = vst [vmem:[%s545] sm:$0xff] %v2794
        %2857 = vst [vmem:[%s545 + $0x8] sm:$0xff] %v2797
        %2858 = vst [vmem:[%s545 + $0x10] sm:$0xff] %v2802
        %2859 = vst [vmem:[%s545 + $0x18] sm:$0xff] %v2805
        %2860 = vst [vmem:[%s545 + $0x20] sm:$0xff] %v2810
        %2861 = vst [vmem:[%s545 + $0x28] sm:$0xff] %v2813
        %2862 = vst [vmem:[%s545 + $0x30] sm:$0xff] %v2818
        %2863 = vst [vmem:[%s545 + $0x38] sm:$0xff] %v2821
        %2864 = vst [vmem:[%s545 + $0x40] sm:$0xff] %v2826
        %2865 = vst [vmem:[%s545 + $0x48] sm:$0xff] %v2829
        %2866 = vst [vmem:[%s545 + $0x50] sm:$0xff] %v2834
        %2867 = vst [vmem:[%s545 + $0x58] sm:$0xff] %v2837
        %2868 = vst [vmem:[%s545 + $0x60] sm:$0xff] %v2842
        %2869 = vst [vmem:[%s545 + $0x68] sm:$0xff] %v2845
        %2870 = vst [vmem:[%s545 + $0x70] sm:$0xff] %v2850
        %2871 = vst [vmem:[%s545 + $0x78] sm:$0xff] %v2853
        %s2872 = sand.u32 %s319, 1
        %s2873 = scalar_lea.sflag [#allocation4], %s2872
        %s2874 = sand.u32 %s319, 1
        %s2875 = smul.addr %s2874, 128
        %s2876 = scalar_lea.vmem [#allocation14], %s2875
        // Predicated region
        $region101: #{tpu_custom_call.1} parent=71 // pred_check
          %p2877 = pneg %p329
        $region102: #{tpu_custom_call.1} parent=71 // pred_check_branch
          %2879 = sbr.rel (%p2877) target = $region104
        $region103: #{tpu_custom_call.1} parent=71 // pred_region
          %s2880 = smul.u32 16, %s33
          %s2882 = ssub.s32 2048, 2048
          %2883 = vsyncadd %s2873, %s2882
          %s2884 = smul.addr %s2880, 128
          %s2885 = scalar_lea.hbm %s13, %s2884
          %s2886 = sshll.u32 %s2876, 4
          %s2887 = int_to_ptr.vmem [resolvable:$true] %s2886
          %2892 = dma.vmem_to_hbm [thread:$0]  %s2887, 2048, %s2885, %s2873, 128, 128, 8
        $region104: #{tpu_custom_call.1} parent=71 // pred_fallthru
          _
      $region72: #{tpu_custom_call.1} parent=5 // pred_fallthru
        _
      %p2893 = scmp.le.s32.totalorder 2, %s28
      // Predicated region
      $region105: #{tpu_custom_call.1} parent=5 // pred_check
        %p2894 = pneg %p2893
      $region106: #{tpu_custom_call.1} parent=5 // pred_check_branch
        %2896 = sbr.rel (%p2894) target = $region108
      $region107: #{tpu_custom_call.1} parent=5 // pred_region
        %s2897 = ssub.s32 %s28, 2
        // Predicated region
        $region109: #{tpu_custom_call.1} parent=107 // pred_check
          %p2898 = pneg %p335
        $region110: #{tpu_custom_call.1} parent=107 // pred_check_branch
          %2900 = sbr.rel (%p2898) target = $region112
        $region111: #{tpu_custom_call.1} parent=107 // pred_region
          %s2901 = sand.u32 %s320, 1
          %s2902 = scalar_lea.sflag [#allocation4], %s2901
          %s2903 = sand.u32 %s320, 1
          %s2904 = smul.addr %s2903, 128
          %s2905 = scalar_lea.vmem [#allocation14], %s2904
          %2906 = dma.done %s2902, 2048
        $region112: #{tpu_custom_call.1} parent=107 // pred_fallthru
          _
      $region108: #{tpu_custom_call.1} parent=5 // pred_fallthru
        _
    $region6: #{tpu_custom_call.1} parent=1 // loop_footer
      %s32 = sadd.s32 1, %s28
    $region7: #{tpu_custom_call.1} parent=1 // loop_footer_branch
      %27 = sbr.rel target = $region3
    $region8: #{tpu_custom_call.1} parent=1 // loop_exit
      _
    %2907 = vsyncpa [#allocation3], 1
    %s2908 = scalar_lea.sflag [#allocation3], 1
    %2909 = vsyncpa %s2908, 1
    %2910 = vsyncpa [#allocation6], 1
    %2911 = vsyncpa [#allocation9], 1
    %2912 = vsyncpa [#allocation12], 1
    %2913 = vsyncpa [#allocation4], 1
    %s2914 = scalar_lea.sflag [#allocation4], 1
    %2915 = vsyncpa %s2914, 1

</llo_original>
